<compile_context>
chip_gen: v7x
topology: tpu7x:2x2x1
jax: 0.10.0
libtpu: 0.0.40
codegen_flags: <defaults>
</compile_context>

<pallas_src>
import functools

import jax
import jax.numpy as jnp
from jax.experimental import pallas as pl
from jax.experimental.pallas import tpu as pltpu


def _round_up(n, m):
    return (n + m - 1) // m * m


def _cdiv(a, b):
    return -(-a // b)


def _vmem_cap_bytes():
    """Physical VMEM per TensorCore; conservative 64 MiB (v7x) fallback."""
    try:
        cap = getattr(pltpu.get_tpu_info(), "vmem_capacity_bytes", None)
        if cap:
            return int(cap)
    except Exception:
        pass
    return 64 * 2**20


def _const_spec(shape):
    """BlockSpec for a grid-invariant (weights/bias) input: constant index_map and
    single buffering (no point double-buffering something that never changes)."""
    idx = lambda i: (0,) * len(shape)
    try:
        return pl.BlockSpec(shape, idx, pipeline_mode=pl.Buffered(1))
    except TypeError:  # older JAX without pipeline_mode: fall back to default buffering
        return pl.BlockSpec(shape, idx)


def _mlp3_kernel(x_ref, w1_ref, b1_ref, w2_ref, b2_ref, w3_ref, b3_ref, o_ref):
    cdt = x_ref.dtype  # compute dtype (bf16 by default); MXU accumulation stays f32
    # Layer 1: f32 MXU accumulation, bias + ReLU in the compute dtype.
    h1 = jnp.dot(x_ref[...], w1_ref[...], preferred_element_type=jnp.float32)
    h1 = jnp.maximum(h1.astype(cdt) + b1_ref[...], 0)
    # Layer 2
    h2 = jnp.dot(h1, w2_ref[...], preferred_element_type=jnp.float32)
    h2 = jnp.maximum(h2.astype(cdt) + b2_ref[...], 0)
    # Layer 3 (lane-dense padded N, no activation); bias add in f32.
    out = jnp.dot(h2, w3_ref[...], preferred_element_type=jnp.float32)
    o_ref[...] = (out + b3_ref[...]).astype(o_ref.dtype)


def prepare_params(params, compute_dtype=jnp.bfloat16):
    """Pre-cast / pre-pad weights once, outside the per-call path.

    params: w1 (in,1024), b1, w2 (1024,512), b2, w3 (512,out), b3 — weights transposed
    vs. PyTorch (fan_in, fan_out); biases accepted as (fan_out,) or (1, fan_out).
    Use compute_dtype=jnp.float32 for a full-precision path on small problems.
    """
    def bias2d(b, fan_out):
        b = jnp.asarray(b, jnp.float32).reshape(1, -1)
        assert b.shape == (1, fan_out), f"bias shape {b.shape} != (1, {fan_out})"
        return b

    w1 = jnp.asarray(params["w1"], jnp.float32)
    w2 = jnp.asarray(params["w2"], jnp.float32)
    w3 = jnp.asarray(params["w3"], jnp.float32)
    in_f, h1_f = w1.shape
    h1_f2, h2_f = w2.shape
    h2_f2, out_f = w3.shape
    assert h1_f == h1_f2 and h2_f == h2_f2, "inconsistent layer shapes"
    b1 = bias2d(params["b1"], h1_f)
    b2 = bias2d(params["b2"], h2_f)
    b3 = bias2d(params["b3"], out_f)

    in_pad = _round_up(in_f, 128)   # lane-dense x loads, clean w1 sublane packing
    n_pad = _round_up(out_f, 128)   # lane-dense (unmasked) output stores

    prepared = {
        "w1": jnp.pad(w1, ((0, in_pad - in_f), (0, 0))).astype(compute_dtype),
        "b1": b1.astype(compute_dtype),
        "w2": w2.astype(compute_dtype),
        "b2": b2.astype(compute_dtype),
        "w3": jnp.pad(w3, ((0, 0), (0, n_pad - out_f))).astype(compute_dtype),
        "b3": jnp.pad(b3, ((0, 0), (0, n_pad - out_f))),  # stays f32
    }
    meta = {"in_features": in_f, "out_features": out_f}
    return prepared, meta


@functools.partial(jax.jit, static_argnames=("out_features", "block_b"))
def myfcnet3_forward(x, prepared, *, out_features, block_b=512):
    """x: (B, in_features) float32. prepared: output of prepare_params()."""
    w1, b1 = prepared["w1"], prepared["b1"]
    w2, b2 = prepared["w2"], prepared["b2"]
    w3, b3 = prepared["w3"], prepared["b3"]
    cdt = w1.dtype
    csz = jnp.dtype(cdt).itemsize
    in_pad, h1_f = w1.shape
    h2_f = w2.shape[1]
    n_pad = w3.shape[1]
    B, in_f = x.shape
    assert in_f <= in_pad, "x has more features than the prepared w1"
    assert block_b % 16 == 0, "block_b must be a multiple of 16 (bf16 sublane packing)"

    # Balanced batch tiling; >=2 tiles whenever B >= 32 so the parallel batch axis can
    # shard across v7x's 2 TensorCores, and minimal padding for awkward batch sizes.
    b16 = _round_up(B, 16)
    n_tiles = 1 if b16 < 32 else max(2, _cdiv(b16, block_b))
    bm = _round_up(_cdiv(b16, n_tiles), 16)
    b_pad = n_tiles * bm

    # Input cast / pad; skip the extra copy entirely when already aligned.
    xb = x.astype(cdt)
    if b_pad != B or in_pad != in_f:
        xb = jnp.pad(xb, ((0, b_pad - B), (0, in_pad - in_f)))

    # VMEM budget from the actual buffers: single-buffered resident weights/biases,
    # double-buffered x/out tiles, in-flight intermediates, plus slack — capped 8 MiB
    # below physical VMEM (56 MiB on v7x; higher cap automatically on v5e/v6e).
    weight_bytes = ((in_pad * h1_f + h1_f * h2_f + h2_f * n_pad + h1_f + h2_f) * csz
                    + n_pad * 4)
    io_bytes = 2 * bm * in_pad * csz + 2 * bm * n_pad * 4
    interm_bytes = bm * (h1_f + h2_f) * (4 + csz)
    vmem_limit = weight_bytes + io_bytes + interm_bytes + 4 * 2**20
    vmem_limit = int(max(min(vmem_limit, _vmem_cap_bytes() - 8 * 2**20), 32 * 2**20))

    flops = 2 * b_pad * (in_pad * h1_f + h1_f * h2_f + h2_f * n_pad)
    bytes_accessed = int(b_pad * in_pad * csz + weight_bytes + b_pad * n_pad * 4)

    out = pl.pallas_call(
        _mlp3_kernel,
        out_shape=jax.ShapeDtypeStruct((b_pad, n_pad), jnp.float32),
        grid_spec=pltpu.PrefetchScalarGridSpec(
            num_scalar_prefetch=0,
            grid=(n_tiles,),
            in_specs=[
                # X tiled over the batch axis (double-buffered by default).
                pl.BlockSpec((bm, in_pad), lambda i: (i, 0)),
                # Grid-invariant weights/biases: VMEM-resident, single-buffered.
                _const_spec((in_pad, h1_f)),
                _const_spec((1, h1_f)),
                _const_spec((h1_f, h2_f)),
                _const_spec((1, h2_f)),
                _const_spec((h2_f, n_pad)),
                _const_spec((1, n_pad)),
            ],
            out_specs=pl.BlockSpec((bm, n_pad), lambda i: (i, 0)),
        ),
        compiler_params=pltpu.CompilerParams(
            dimension_semantics=("parallel",),
            vmem_limit_bytes=vmem_limit,
        ),
        cost_estimate=pl.CostEstimate(
            flops=flops, transcendentals=0, bytes_accessed=bytes_accessed),
    )(xb, w1, b1, w2, b2, w3, b3)

    # Slice off batch padding and the lane-padding of the last layer.
    return out[:B, :out_features]


def init_params(key, in_features, out_features):
    """PyTorch nn.Linear-style init U(-1/sqrt(fan_in), 1/sqrt(fan_in)).
    Weights stored transposed, shape (fan_in, fan_out); master copies in f32."""
    dims = [(in_features, 1024), (1024, 512), (512, out_features)]
    params = {}
    for idx, (fan_in, fan_out) in enumerate(dims, start=1):
        key, kw, kb = jax.random.split(key, 3)
        bound = 1.0 / jnp.sqrt(jnp.float32(fan_in))
        params[f"w{idx}"] = jax.random.uniform(
            kw, (fan_in, fan_out), jnp.float32, minval=-bound, maxval=bound)
        params[f"b{idx}"] = jax.random.uniform(
            kb, (1, fan_out), jnp.float32, minval=-bound, maxval=bound)
    return params


def reference_forward(x, params, compute_dtype=jnp.bfloat16):
    """Reference with the same numerics as the kernel (compute-dtype operands and
    layer-1/2 epilogues, f32 accumulation, f32 final bias)."""
    c = lambda a: a.astype(compute_dtype)
    h1 = jnp.dot(c(x), c(params["w1"]), preferred_element_type=jnp.float32)
    h1 = jnp.maximum(h1.astype(compute_dtype) + c(params["b1"]), 0)
    h2 = jnp.dot(h1, c(params["w2"]), preferred_element_type=jnp.float32)
    h2 = jnp.maximum(h2.astype(compute_dtype) + c(params["b2"]), 0)
    out = jnp.dot(h2, c(params["w3"]), preferred_element_type=jnp.float32)
    return out + params["b3"]


if __name__ == "__main__":
    key = jax.random.PRNGKey(0)
    in_features, out_features, batch = 32, 16, 8

    kx, kp = jax.random.split(key)
    x = jax.random.normal(kx, (batch, in_features), jnp.float32)
    params = init_params(kp, in_features, out_features)

    # Pre-cast / pre-pad weights once, outside the per-call path.
    prepared, meta = prepare_params(params)

    out = jax.block_until_ready(
        myfcnet3_forward(x, prepared, out_features=meta["out_features"]))

    ref = reference_forward(x, params)
    assert out.shape == (batch, out_features)
    assert jnp.allclose(out, ref, atol=2e-2, rtol=2e-2), "mismatch vs reference"

    print("KERNEL_OK")
</pallas_src>

<mosaic_0001>
module attributes {stable_mosaic.version = 11 : i64} {
  func.func @_mlp3_kernel(%arg0: i32, %arg1: memref<16x128xbf16, #tpu.memory_space<vmem>>, %arg2: memref<128x1024xbf16, #tpu.memory_space<vmem>>, %arg3: memref<1x1024xbf16, #tpu.memory_space<vmem>>, %arg4: memref<1024x512xbf16, #tpu.memory_space<vmem>>, %arg5: memref<1x512xbf16, #tpu.memory_space<vmem>>, %arg6: memref<512x128xbf16, #tpu.memory_space<vmem>>, %arg7: memref<1x128xf32, #tpu.memory_space<vmem>>, %arg8: memref<16x128xf32, #tpu.memory_space<vmem>>) attributes {dimension_semantics = [#tpu.dimension_semantics<parallel>], iteration_bounds = array<i64: 1>, scalar_prefetch = 0 : i64, scratch_operands = 0 : i64, tpu.core_type = #tpu.core_type<tc>, window_params = [{transform_indices = @transform_0, window_bounds = array<i64: 16, 128>}, {pipeline_mode = #tpu.pipeline_mode<synchronous>, transform_indices = @transform_1, window_bounds = array<i64: 128, 1024>}, {pipeline_mode = #tpu.pipeline_mode<synchronous>, transform_indices = @transform_2, window_bounds = array<i64: 1, 1024>}, {pipeline_mode = #tpu.pipeline_mode<synchronous>, transform_indices = @transform_3, window_bounds = array<i64: 1024, 512>}, {pipeline_mode = #tpu.pipeline_mode<synchronous>, transform_indices = @transform_4, window_bounds = array<i64: 1, 512>}, {pipeline_mode = #tpu.pipeline_mode<synchronous>, transform_indices = @transform_5, window_bounds = array<i64: 512, 128>}, {pipeline_mode = #tpu.pipeline_mode<synchronous>, transform_indices = @transform_6, window_bounds = array<i64: 1, 128>}, {transform_indices = @transform_7, window_bounds = array<i64: 16, 128>}]} {
    %c0 = arith.constant 0 : index
    %c0_0 = arith.constant 0 : index
    %0 = vector.load %arg1[%c0, %c0_0] : memref<16x128xbf16, #tpu.memory_space<vmem>>, vector<16x128xbf16>
    %c0_1 = arith.constant 0 : index
    %c0_2 = arith.constant 0 : index
    %1 = vector.load %arg2[%c0_1, %c0_2] : memref<128x1024xbf16, #tpu.memory_space<vmem>>, vector<128x1024xbf16>
    %cst = arith.constant dense<0.000000e+00> : vector<16x1024xf32>
    %2 = tpu.matmul %0, %1, %cst {dimension_numbers = #tpu.dot_dimension_numbers<[1], [0], [0], [1], [0, 0, 1, 1], [], []>} : vector<16x128xbf16>, vector<128x1024xbf16>, vector<16x1024xf32> -> vector<16x1024xf32>
    %3 = arith.truncf %2 : vector<16x1024xf32> to vector<16x1024xbf16>
    %c0_3 = arith.constant 0 : index
    %c0_4 = arith.constant 0 : index
    %4 = vector.load %arg3[%c0_3, %c0_4] : memref<1x1024xbf16, #tpu.memory_space<vmem>>, vector<1x1024xbf16>
    %5 = vector.broadcast %4 : vector<1x1024xbf16> to vector<16x1024xbf16>
    %6 = arith.addf %3, %5 : vector<16x1024xbf16>
    %cst_5 = arith.constant 0.000000e+00 : bf16
    %7 = vector.broadcast %cst_5 : bf16 to vector<16x1024xbf16>
    %8 = arith.maximumf %6, %7 : vector<16x1024xbf16>
    %c0_6 = arith.constant 0 : index
    %c0_7 = arith.constant 0 : index
    %9 = vector.load %arg4[%c0_6, %c0_7] : memref<1024x512xbf16, #tpu.memory_space<vmem>>, vector<1024x512xbf16>
    %cst_8 = arith.constant dense<0.000000e+00> : vector<16x512xf32>
    %10 = tpu.matmul %8, %9, %cst_8 {dimension_numbers = #tpu.dot_dimension_numbers<[1], [0], [0], [1], [0, 0, 1, 1], [], []>} : vector<16x1024xbf16>, vector<1024x512xbf16>, vector<16x512xf32> -> vector<16x512xf32>
    %11 = arith.truncf %10 : vector<16x512xf32> to vector<16x512xbf16>
    %c0_9 = arith.constant 0 : index
    %c0_10 = arith.constant 0 : index
    %12 = vector.load %arg5[%c0_9, %c0_10] : memref<1x512xbf16, #tpu.memory_space<vmem>>, vector<1x512xbf16>
    %13 = vector.broadcast %12 : vector<1x512xbf16> to vector<16x512xbf16>
    %14 = arith.addf %11, %13 : vector<16x512xbf16>
    %cst_11 = arith.constant 0.000000e+00 : bf16
    %15 = vector.broadcast %cst_11 : bf16 to vector<16x512xbf16>
    %16 = arith.maximumf %14, %15 : vector<16x512xbf16>
    %c0_12 = arith.constant 0 : index
    %c0_13 = arith.constant 0 : index
    %17 = vector.load %arg6[%c0_12, %c0_13] : memref<512x128xbf16, #tpu.memory_space<vmem>>, vector<512x128xbf16>
    %cst_14 = arith.constant dense<0.000000e+00> : vector<16x128xf32>
    %18 = tpu.matmul %16, %17, %cst_14 {dimension_numbers = #tpu.dot_dimension_numbers<[1], [0], [0], [1], [0, 0, 1, 1], [], []>} : vector<16x512xbf16>, vector<512x128xbf16>, vector<16x128xf32> -> vector<16x128xf32>
    %c0_15 = arith.constant 0 : index
    %c0_16 = arith.constant 0 : index
    %19 = vector.load %arg7[%c0_15, %c0_16] : memref<1x128xf32, #tpu.memory_space<vmem>>, vector<1x128xf32>
    %20 = vector.broadcast %19 : vector<1x128xf32> to vector<16x128xf32>
    %21 = arith.addf %18, %20 : vector<16x128xf32>
    %c0_17 = arith.constant 0 : index
    %c0_18 = arith.constant 0 : index
    %22 = vector.load %arg8[%c0_17, %c0_18] : memref<16x128xf32, #tpu.memory_space<vmem>>, vector<16x128xf32>
    tpu.vector_store %arg8[%c0_17, %c0_18], %21 {strides = array<i32>} : memref<16x128xf32, #tpu.memory_space<vmem>>, vector<16x128xf32>,
    return
  }
  func.func @transform_0(%arg0: i32) -> (i32, i32) {
    %c0_i32 = arith.constant 0 : i32
    %c0_i32_0 = arith.constant 0 : i32
    return %arg0, %c0_i32 : i32, i32
  }
  func.func @transform_1(%arg0: i32) -> (i32, i32) {
    %c0_i32 = arith.constant 0 : i32
    %c0_i32_0 = arith.constant 0 : i32
    %c0_i32_1 = arith.constant 0 : i32
    return %c0_i32, %c0_i32_0 : i32, i32
  }
  func.func @transform_2(%arg0: i32) -> (i32, i32) {
    %c0_i32 = arith.constant 0 : i32
    %c0_i32_0 = arith.constant 0 : i32
    %c0_i32_1 = arith.constant 0 : i32
    return %c0_i32, %c0_i32_0 : i32, i32
  }
  func.func @transform_3(%arg0: i32) -> (i32, i32) {
    %c0_i32 = arith.constant 0 : i32
    %c0_i32_0 = arith.constant 0 : i32
    %c0_i32_1 = arith.constant 0 : i32
    return %c0_i32, %c0_i32_0 : i32, i32
  }
  func.func @transform_4(%arg0: i32) -> (i32, i32) {
    %c0_i32 = arith.constant 0 : i32
    %c0_i32_0 = arith.constant 0 : i32
    %c0_i32_1 = arith.constant 0 : i32
    return %c0_i32, %c0_i32_0 : i32, i32
  }
  func.func @transform_5(%arg0: i32) -> (i32, i32) {
    %c0_i32 = arith.constant 0 : i32
    %c0_i32_0 = arith.constant 0 : i32
    %c0_i32_1 = arith.constant 0 : i32
    return %c0_i32, %c0_i32_0 : i32, i32
  }
  func.func @transform_6(%arg0: i32) -> (i32, i32) {
    %c0_i32 = arith.constant 0 : i32
    %c0_i32_0 = arith.constant 0 : i32
    %c0_i32_1 = arith.constant 0 : i32
    return %c0_i32, %c0_i32_0 : i32, i32
  }
  func.func @transform_7(%arg0: i32) -> (i32, i32) {
    %c0_i32 = arith.constant 0 : i32
    %c0_i32_0 = arith.constant 0 : i32
    return %arg0, %c0_i32 : i32, i32
  }
}

</mosaic_0001>

<llo_original>
// kernel: myfcnet3_forward.1
$region0: #{myfcnet3_forward.1}
  #allocation0 [shape = 'u32[]', space=smem, size = 0x4, offset = 0x4, fixed_abs, tag = 'smem constant byte address 0x4 - core index']
  #allocation1 [shape = 'u32[144,128]{1,0:T(1,128)}', space=vmem, size = 0x12000, scoped, tag = 'internal scratch']
  %s0 = inlined_call_operand.vmem [shape: bf16[16,128], index: 0, kind: input, shape index: {}]
  %s1 = inlined_call_operand.hbm [shape: bf16[128,1024], index: 1, kind: input, shape index: {}]
  %s2 = inlined_call_operand.vmem [shape: bf16[1,1024], index: 2, kind: input, shape index: {}]
  %s3 = inlined_call_operand.hbm [shape: bf16[1024,512], index: 3, kind: input, shape index: {}]
  %s4 = inlined_call_operand.vmem [shape: bf16[1,512], index: 4, kind: input, shape index: {}]
  %s5 = inlined_call_operand.hbm [shape: bf16[512,128], index: 5, kind: input, shape index: {}]
  %s6 = inlined_call_operand.vmem [shape: f32[1,128], index: 6, kind: input, shape index: {}]
  %s7 = inlined_call_operand.vmem [shape: f32[16,128], index: 7, kind: output, shape index: {}]
  %s8 = sld [smem:[#allocation0]]
  $region50: #{myfcnet3_forward.1} parent=0
    _
  %s10 = ssub.s32 1, %s8
  %s11 = scalar_select 0, %s10, %s8
  $region1: #{myfcnet3_forward.1} parent=0
    #allocation2 [shape = 'u8[262144]{0}', space=vmem, size = 0x40000, scoped, tag = 'input window, operand 1, single buffered']
    #allocation3 [shape = 's32[1]{0}', space=sflag, size = 0x4, scoped, tag = 'scoped memory for myfcnet3_forward.1']
    #allocation4 [shape = 'u8[1048576]{0}', space=vmem, size = 0x100000, scoped, tag = 'input window, operand 3, single buffered']
    #allocation5 [shape = 's32[1]{0}', space=sflag, size = 0x4, scoped, tag = 'scoped memory for myfcnet3_forward.1']
    #allocation6 [shape = 'u8[131072]{0}', space=vmem, size = 0x20000, scoped, tag = 'input window, operand 5, single buffered']
    %12 = vsyncpa [#allocation3], 0
    %13 = vsyncpa [#allocation5], 0
    // Predicated region
    $region2: #{myfcnet3_forward.1} parent=1 // pred_check
      _
    $region3: #{myfcnet3_forward.1} parent=1 // pred_check_branch
      %15 = sbr.rel (0) target = $region5
    $region4: #{myfcnet3_forward.1} parent=1 // pred_region
      _
    $region5: #{myfcnet3_forward.1} parent=1 // pred_fallthru
      _
    // Predicated region
    $region6: #{myfcnet3_forward.1} parent=1 // pred_check
      _
    $region7: #{myfcnet3_forward.1} parent=1 // pred_check_branch
      %17 = sbr.rel (0) target = $region9
    $region8: #{myfcnet3_forward.1} parent=1 // pred_region
      %s19 = ssub.s32 8192, 8192
      %20 = vsyncadd [#allocation3], %s19
      %s21 = sshll.u32 [#allocation2], 4
      %s22 = int_to_ptr.vmem [resolvable:$true] %s21
      %27 = dma.hbm_to_vmem [thread:$0]  %s1, 8192, %s22, [#allocation3], 512, 512, 32
    $region9: #{myfcnet3_forward.1} parent=1 // pred_fallthru
      _
    // Predicated region
    $region10: #{myfcnet3_forward.1} parent=1 // pred_check
      _
    $region11: #{myfcnet3_forward.1} parent=1 // pred_check_branch
      %29 = sbr.rel (0) target = $region13
    $region12: #{myfcnet3_forward.1} parent=1 // pred_region
      _
    $region13: #{myfcnet3_forward.1} parent=1 // pred_fallthru
      _
    // Predicated region
    $region14: #{myfcnet3_forward.1} parent=1 // pred_check
      _
    $region15: #{myfcnet3_forward.1} parent=1 // pred_check_branch
      %31 = sbr.rel (0) target = $region17
    $region16: #{myfcnet3_forward.1} parent=1 // pred_region
      %s33 = ssub.s32 32768, 32768
      %34 = vsyncadd [#allocation5], %s33
      %s35 = sshll.u32 [#allocation4], 4
      %s36 = int_to_ptr.vmem [resolvable:$true] %s35
      %41 = dma.hbm_to_vmem [thread:$0]  %s3, 32768, %s36, [#allocation5], 256, 256, 16
    $region17: #{myfcnet3_forward.1} parent=1 // pred_fallthru
      _
    // Predicated region
    $region18: #{myfcnet3_forward.1} parent=1 // pred_check
      _
    $region19: #{myfcnet3_forward.1} parent=1 // pred_check_branch
      %43 = sbr.rel (0) target = $region21
    $region20: #{myfcnet3_forward.1} parent=1 // pred_region
      _
    $region21: #{myfcnet3_forward.1} parent=1 // pred_fallthru
      _
    // Predicated region
    $region22: #{myfcnet3_forward.1} parent=1 // pred_check
      _
    $region23: #{myfcnet3_forward.1} parent=1 // pred_check_branch
      %45 = sbr.rel (0) target = $region25
    $region24: #{myfcnet3_forward.1} parent=1 // pred_region
      %s47 = ssub.s32 4096, 4096
      %48 = vsyncadd [#allocation5], %s47
      %s49 = sshll.u32 [#allocation6], 4
      %s50 = int_to_ptr.vmem [resolvable:$true] %s49
      %55 = dma.hbm_to_vmem [thread:$0]  %s5, 4096, %s50, [#allocation5], 64, 64, 4
    $region25: #{myfcnet3_forward.1} parent=1 // pred_fallthru
      _
    // Predicated region
    $region26: #{myfcnet3_forward.1} parent=1 // pred_check
      _
    $region27: #{myfcnet3_forward.1} parent=1 // pred_check_branch
      %57 = sbr.rel (0) target = $region29
    $region28: #{myfcnet3_forward.1} parent=1 // pred_region
      _
    $region29: #{myfcnet3_forward.1} parent=1 // pred_fallthru
      _
    // Predicated region
    $region30: #{myfcnet3_forward.1} parent=1 // pred_check
      _
    $region31: #{myfcnet3_forward.1} parent=1 // pred_check_branch
      %59 = sbr.rel (0) target = $region33
    $region32: #{myfcnet3_forward.1} parent=1 // pred_region
      %60 = dma.done [#allocation3], 8192
    $region33: #{myfcnet3_forward.1} parent=1 // pred_fallthru
      _
    // Predicated region
    $region34: #{myfcnet3_forward.1} parent=1 // pred_check
      _
    $region35: #{myfcnet3_forward.1} parent=1 // pred_check_branch
      %62 = sbr.rel (0) target = $region37
    $region36: #{myfcnet3_forward.1} parent=1 // pred_region
      %63 = dma.done [#allocation5], 32768
    $region37: #{myfcnet3_forward.1} parent=1 // pred_fallthru
      _
    // Predicated region
    $region38: #{myfcnet3_forward.1} parent=1 // pred_check
      _
    $region39: #{myfcnet3_forward.1} parent=1 // pred_check_branch
      %65 = sbr.rel (0) target = $region41
    $region40: #{myfcnet3_forward.1} parent=1 // pred_region
      %66 = dma.done [#allocation5], 4096
    $region41: #{myfcnet3_forward.1} parent=1 // pred_fallthru
      _
    %v68 = vld [vmem:[%s0] sm:$0xf]
    %v69 = vld [vmem:[%s0 + $0x4] sm:$0xf]
    %v70 = vld [vmem:[#allocation2] sm:$0xff]
    %v71 = vld [vmem:[#allocation2 + $0x8] sm:$0xff]
    %v72 = vld [vmem:[#allocation2 + $0x10] sm:$0xff]
    %v73 = vld [vmem:[#allocation2 + $0x18] sm:$0xff]
    %v74 = vld [vmem:[#allocation2 + $0x20] sm:$0xff]
    %v75 = vld [vmem:[#allocation2 + $0x28] sm:$0xff]
    %v76 = vld [vmem:[#allocation2 + $0x30] sm:$0xff]
    %v77 = vld [vmem:[#allocation2 + $0x38] sm:$0xff]
    %v78 = vld [vmem:[#allocation2 + $0x40] sm:$0xff]
    %v79 = vld [vmem:[#allocation2 + $0x48] sm:$0xff]
    %v80 = vld [vmem:[#allocation2 + $0x50] sm:$0xff]
    %v81 = vld [vmem:[#allocation2 + $0x58] sm:$0xff]
    %v82 = vld [vmem:[#allocation2 + $0x60] sm:$0xff]
    %v83 = vld [vmem:[#allocation2 + $0x68] sm:$0xff]
    %v84 = vld [vmem:[#allocation2 + $0x70] sm:$0xff]
    %v85 = vld [vmem:[#allocation2 + $0x78] sm:$0xff]
    %v86 = vld [vmem:[#allocation2 + $0x80] sm:$0xff]
    %v87 = vld [vmem:[#allocation2 + $0x88] sm:$0xff]
    %v88 = vld [vmem:[#allocation2 + $0x90] sm:$0xff]
    %v89 = vld [vmem:[#allocation2 + $0x98] sm:$0xff]
    %v90 = vld [vmem:[#allocation2 + $0xa0] sm:$0xff]
    %v91 = vld [vmem:[#allocation2 + $0xa8] sm:$0xff]
    %v92 = vld [vmem:[#allocation2 + $0xb0] sm:$0xff]
    %v93 = vld [vmem:[#allocation2 + $0xb8] sm:$0xff]
    %v94 = vld [vmem:[#allocation2 + $0xc0] sm:$0xff]
    %v95 = vld [vmem:[#allocation2 + $0xc8] sm:$0xff]
    %v96 = vld [vmem:[#allocation2 + $0xd0] sm:$0xff]
    %v97 = vld [vmem:[#allocation2 + $0xd8] sm:$0xff]
    %v98 = vld [vmem:[#allocation2 + $0xe0] sm:$0xff]
    %v99 = vld [vmem:[#allocation2 + $0xe8] sm:$0xff]
    %v100 = vld [vmem:[#allocation2 + $0xf0] sm:$0xff]
    %v101 = vld [vmem:[#allocation2 + $0xf8] sm:$0xff]
    %v102 = vld [vmem:[#allocation2 + $0x100] sm:$0xff]
    %v103 = vld [vmem:[#allocation2 + $0x108] sm:$0xff]
    %v104 = vld [vmem:[#allocation2 + $0x110] sm:$0xff]
    %v105 = vld [vmem:[#allocation2 + $0x118] sm:$0xff]
    %v106 = vld [vmem:[#allocation2 + $0x120] sm:$0xff]
    %v107 = vld [vmem:[#allocation2 + $0x128] sm:$0xff]
    %v108 = vld [vmem:[#allocation2 + $0x130] sm:$0xff]
    %v109 = vld [vmem:[#allocation2 + $0x138] sm:$0xff]
    %v110 = vld [vmem:[#allocation2 + $0x140] sm:$0xff]
    %v111 = vld [vmem:[#allocation2 + $0x148] sm:$0xff]
    %v112 = vld [vmem:[#allocation2 + $0x150] sm:$0xff]
    %v113 = vld [vmem:[#allocation2 + $0x158] sm:$0xff]
    %v114 = vld [vmem:[#allocation2 + $0x160] sm:$0xff]
    %v115 = vld [vmem:[#allocation2 + $0x168] sm:$0xff]
    %v116 = vld [vmem:[#allocation2 + $0x170] sm:$0xff]
    %v117 = vld [vmem:[#allocation2 + $0x178] sm:$0xff]
    %v118 = vld [vmem:[#allocation2 + $0x180] sm:$0xff]
    %v119 = vld [vmem:[#allocation2 + $0x188] sm:$0xff]
    %v120 = vld [vmem:[#allocation2 + $0x190] sm:$0xff]
    %v121 = vld [vmem:[#allocation2 + $0x198] sm:$0xff]
    %v122 = vld [vmem:[#allocation2 + $0x1a0] sm:$0xff]
    %v123 = vld [vmem:[#allocation2 + $0x1a8] sm:$0xff]
    %v124 = vld [vmem:[#allocation2 + $0x1b0] sm:$0xff]
    %v125 = vld [vmem:[#allocation2 + $0x1b8] sm:$0xff]
    %v126 = vld [vmem:[#allocation2 + $0x1c0] sm:$0xff]
    %v127 = vld [vmem:[#allocation2 + $0x1c8] sm:$0xff]
    %v128 = vld [vmem:[#allocation2 + $0x1d0] sm:$0xff]
    %v129 = vld [vmem:[#allocation2 + $0x1d8] sm:$0xff]
    %v130 = vld [vmem:[#allocation2 + $0x1e0] sm:$0xff]
    %v131 = vld [vmem:[#allocation2 + $0x1e8] sm:$0xff]
    %v132 = vld [vmem:[#allocation2 + $0x1f0] sm:$0xff]
    %v133 = vld [vmem:[#allocation2 + $0x1f8] sm:$0xff]
    %v136 = vunpack.c.l.b16 %v68
    %v137 = vunpack.c.l.b16 %v69
    %v138 = vpack.c.b16 %v137, %v136
    %v204 = vunpack.c.l.b16 %v70
    %v205 = vunpack.c.h.b16 %v70
    %v206 = vunpack.c.l.b16 %v71
    %v207 = vunpack.c.h.b16 %v71
    %v208 = vunpack.c.l.b16 %v72
    %v209 = vunpack.c.h.b16 %v72
    %v210 = vunpack.c.l.b16 %v73
    %v211 = vunpack.c.h.b16 %v73
    %v212 = vunpack.c.l.b16 %v74
    %v213 = vunpack.c.h.b16 %v74
    %v214 = vunpack.c.l.b16 %v75
    %v215 = vunpack.c.h.b16 %v75
    %v216 = vunpack.c.l.b16 %v76
    %v217 = vunpack.c.h.b16 %v76
    %v218 = vunpack.c.l.b16 %v77
    %v219 = vunpack.c.h.b16 %v77
    %v220 = vunpack.c.l.b16 %v78
    %v221 = vunpack.c.h.b16 %v78
    %v222 = vunpack.c.l.b16 %v79
    %v223 = vunpack.c.h.b16 %v79
    %v224 = vunpack.c.l.b16 %v80
    %v225 = vunpack.c.h.b16 %v80
    %v226 = vunpack.c.l.b16 %v81
    %v227 = vunpack.c.h.b16 %v81
    %v228 = vunpack.c.l.b16 %v82
    %v229 = vunpack.c.h.b16 %v82
    %v230 = vunpack.c.l.b16 %v83
    %v231 = vunpack.c.h.b16 %v83
    %v232 = vunpack.c.l.b16 %v84
    %v233 = vunpack.c.h.b16 %v84
    %v234 = vunpack.c.l.b16 %v85
    %v235 = vunpack.c.h.b16 %v85
    %v236 = vunpack.c.l.b16 %v86
    %v237 = vunpack.c.h.b16 %v86
    %v238 = vunpack.c.l.b16 %v87
    %v239 = vunpack.c.h.b16 %v87
    %v240 = vunpack.c.l.b16 %v88
    %v241 = vunpack.c.h.b16 %v88
    %v242 = vunpack.c.l.b16 %v89
    %v243 = vunpack.c.h.b16 %v89
    %v244 = vunpack.c.l.b16 %v90
    %v245 = vunpack.c.h.b16 %v90
    %v246 = vunpack.c.l.b16 %v91
    %v247 = vunpack.c.h.b16 %v91
    %v248 = vunpack.c.l.b16 %v92
    %v249 = vunpack.c.h.b16 %v92
    %v250 = vunpack.c.l.b16 %v93
    %v251 = vunpack.c.h.b16 %v93
    %v252 = vunpack.c.l.b16 %v94
    %v253 = vunpack.c.h.b16 %v94
    %v254 = vunpack.c.l.b16 %v95
    %v255 = vunpack.c.h.b16 %v95
    %v256 = vunpack.c.l.b16 %v96
    %v257 = vunpack.c.h.b16 %v96
    %v258 = vunpack.c.l.b16 %v97
    %v259 = vunpack.c.h.b16 %v97
    %v260 = vunpack.c.l.b16 %v98
    %v261 = vunpack.c.h.b16 %v98
    %v262 = vunpack.c.l.b16 %v99
    %v263 = vunpack.c.h.b16 %v99
    %v264 = vunpack.c.l.b16 %v100
    %v265 = vunpack.c.h.b16 %v100
    %v266 = vunpack.c.l.b16 %v101
    %v267 = vunpack.c.h.b16 %v101
    %v268 = vunpack.c.l.b16 %v102
    %v269 = vunpack.c.h.b16 %v102
    %v270 = vunpack.c.l.b16 %v103
    %v271 = vunpack.c.h.b16 %v103
    %v272 = vunpack.c.l.b16 %v104
    %v273 = vunpack.c.h.b16 %v104
    %v274 = vunpack.c.l.b16 %v105
    %v275 = vunpack.c.h.b16 %v105
    %v276 = vunpack.c.l.b16 %v106
    %v277 = vunpack.c.h.b16 %v106
    %v278 = vunpack.c.l.b16 %v107
    %v279 = vunpack.c.h.b16 %v107
    %v280 = vunpack.c.l.b16 %v108
    %v281 = vunpack.c.h.b16 %v108
    %v282 = vunpack.c.l.b16 %v109
    %v283 = vunpack.c.h.b16 %v109
    %v284 = vunpack.c.l.b16 %v110
    %v285 = vunpack.c.h.b16 %v110
    %v286 = vunpack.c.l.b16 %v111
    %v287 = vunpack.c.h.b16 %v111
    %v288 = vunpack.c.l.b16 %v112
    %v289 = vunpack.c.h.b16 %v112
    %v290 = vunpack.c.l.b16 %v113
    %v291 = vunpack.c.h.b16 %v113
    %v292 = vunpack.c.l.b16 %v114
    %v293 = vunpack.c.h.b16 %v114
    %v294 = vunpack.c.l.b16 %v115
    %v295 = vunpack.c.h.b16 %v115
    %v296 = vunpack.c.l.b16 %v116
    %v297 = vunpack.c.h.b16 %v116
    %v298 = vunpack.c.l.b16 %v117
    %v299 = vunpack.c.h.b16 %v117
    %v300 = vunpack.c.l.b16 %v118
    %v301 = vunpack.c.h.b16 %v118
    %v302 = vunpack.c.l.b16 %v119
    %v303 = vunpack.c.h.b16 %v119
    %v304 = vunpack.c.l.b16 %v120
    %v305 = vunpack.c.h.b16 %v120
    %v306 = vunpack.c.l.b16 %v121
    %v307 = vunpack.c.h.b16 %v121
    %v308 = vunpack.c.l.b16 %v122
    %v309 = vunpack.c.h.b16 %v122
    %v310 = vunpack.c.l.b16 %v123
    %v311 = vunpack.c.h.b16 %v123
    %v312 = vunpack.c.l.b16 %v124
    %v313 = vunpack.c.h.b16 %v124
    %v314 = vunpack.c.l.b16 %v125
    %v315 = vunpack.c.h.b16 %v125
    %v316 = vunpack.c.l.b16 %v126
    %v317 = vunpack.c.h.b16 %v126
    %v318 = vunpack.c.l.b16 %v127
    %v319 = vunpack.c.h.b16 %v127
    %v320 = vunpack.c.l.b16 %v128
    %v321 = vunpack.c.h.b16 %v128
    %v322 = vunpack.c.l.b16 %v129
    %v323 = vunpack.c.h.b16 %v129
    %v324 = vunpack.c.l.b16 %v130
    %v325 = vunpack.c.h.b16 %v130
    %v326 = vunpack.c.l.b16 %v131
    %v327 = vunpack.c.h.b16 %v131
    %v328 = vunpack.c.l.b16 %v132
    %v329 = vunpack.c.h.b16 %v132
    %v330 = vunpack.c.l.b16 %v133
    %v331 = vunpack.c.h.b16 %v133
    %v332 = vpack.c.b16 %v212, %v204
    %v333 = vpack.c.b16 %v213, %v205
    %v334 = vpack.c.b16 %v214, %v206
    %v335 = vpack.c.b16 %v215, %v207
    %v336 = vpack.c.b16 %v216, %v208
    %v337 = vpack.c.b16 %v217, %v209
    %v338 = vpack.c.b16 %v218, %v210
    %v339 = vpack.c.b16 %v219, %v211
    %v340 = vpack.c.b16 %v228, %v220
    %v341 = vpack.c.b16 %v229, %v221
    %v342 = vpack.c.b16 %v230, %v222
    %v343 = vpack.c.b16 %v231, %v223
    %v344 = vpack.c.b16 %v232, %v224
    %v345 = vpack.c.b16 %v233, %v225
    %v346 = vpack.c.b16 %v234, %v226
    %v347 = vpack.c.b16 %v235, %v227
    %v348 = vpack.c.b16 %v244, %v236
    %v349 = vpack.c.b16 %v245, %v237
    %v350 = vpack.c.b16 %v246, %v238
    %v351 = vpack.c.b16 %v247, %v239
    %v352 = vpack.c.b16 %v248, %v240
    %v353 = vpack.c.b16 %v249, %v241
    %v354 = vpack.c.b16 %v250, %v242
    %v355 = vpack.c.b16 %v251, %v243
    %v356 = vpack.c.b16 %v260, %v252
    %v357 = vpack.c.b16 %v261, %v253
    %v358 = vpack.c.b16 %v262, %v254
    %v359 = vpack.c.b16 %v263, %v255
    %v360 = vpack.c.b16 %v264, %v256
    %v361 = vpack.c.b16 %v265, %v257
    %v362 = vpack.c.b16 %v266, %v258
    %v363 = vpack.c.b16 %v267, %v259
    %v364 = vpack.c.b16 %v276, %v268
    %v365 = vpack.c.b16 %v277, %v269
    %v366 = vpack.c.b16 %v278, %v270
    %v367 = vpack.c.b16 %v279, %v271
    %v368 = vpack.c.b16 %v280, %v272
    %v369 = vpack.c.b16 %v281, %v273
    %v370 = vpack.c.b16 %v282, %v274
    %v371 = vpack.c.b16 %v283, %v275
    %v372 = vpack.c.b16 %v292, %v284
    %v373 = vpack.c.b16 %v293, %v285
    %v374 = vpack.c.b16 %v294, %v286
    %v375 = vpack.c.b16 %v295, %v287
    %v376 = vpack.c.b16 %v296, %v288
    %v377 = vpack.c.b16 %v297, %v289
    %v378 = vpack.c.b16 %v298, %v290
    %v379 = vpack.c.b16 %v299, %v291
    %v380 = vpack.c.b16 %v308, %v300
    %v381 = vpack.c.b16 %v309, %v301
    %v382 = vpack.c.b16 %v310, %v302
    %v383 = vpack.c.b16 %v311, %v303
    %v384 = vpack.c.b16 %v312, %v304
    %v385 = vpack.c.b16 %v313, %v305
    %v386 = vpack.c.b16 %v314, %v306
    %v387 = vpack.c.b16 %v315, %v307
    %v388 = vpack.c.b16 %v324, %v316
    %v389 = vpack.c.b16 %v325, %v317
    %v390 = vpack.c.b16 %v326, %v318
    %v391 = vpack.c.b16 %v327, %v319
    %v392 = vpack.c.b16 %v328, %v320
    %v393 = vpack.c.b16 %v329, %v321
    %v394 = vpack.c.b16 %v330, %v322
    %v395 = vpack.c.b16 %v331, %v323
    %460 = vmatprep.subr.bf16.mxu0 %v333
    %461 = vmatpush1.bf16.msra.mxu0 %v332
    %462 = vmatprep.subr.bf16.mxu0 %v341
    %463 = vmatpush1.bf16.msra.mxu0 %v340
    %464 = vmatprep.subr.bf16.mxu0 %v349
    %465 = vmatpush1.bf16.msra.mxu0 %v348
    %466 = vmatprep.subr.bf16.mxu0 %v357
    %467 = vmatpush1.bf16.msra.mxu0 %v356
    %468 = vmatprep.subr.bf16.mxu0 %v365
    %469 = vmatpush1.bf16.msra.mxu0 %v364
    %470 = vmatprep.subr.bf16.mxu0 %v373
    %471 = vmatpush1.bf16.msra.mxu0 %v372
    %472 = vmatprep.subr.bf16.mxu0 %v381
    %473 = vmatpush1.bf16.msra.mxu0 %v380
    %474 = vmatprep.subr.bf16.mxu0 %v389
    %475 = vmatpush1.bf16.msra.mxu0 %v388
    %476 = vmatprep.subr.bf16.mxu0 0
    %477 = vmatpush1.bf16.msra.mxu0 0
    %478 = vmatprep.subr.bf16.mxu0 0
    %479 = vmatpush1.bf16.msra.mxu0 0
    %480 = vmatprep.subr.bf16.mxu0 0
    %481 = vmatpush1.bf16.msra.mxu0 0
    %482 = vmatprep.subr.bf16.mxu0 0
    %483 = vmatpush1.bf16.msra.mxu0 0
    %484 = vmatprep.subr.bf16.mxu0 0
    %485 = vmatpush1.bf16.msra.mxu0 0
    %486 = vmatprep.subr.bf16.mxu0 0
    %487 = vmatpush1.bf16.msra.mxu0 0
    %488 = vmatprep.subr.bf16.mxu0 0
    %489 = vmatpush1.bf16.msra.mxu0 0
    %490 = vmatprep.subr.bf16.mxu0 0
    %491 = vmatpush1.bf16.msra.mxu0 0
    %492 = vmatprep.mubr.bf16.mxu0 0
    %493 = vmatmul.mubr.bf16.gmra.mrb[0].mxu0 %v138
    %v494 = vpop.f32.mrb[0].mxu0
    %v495 = vadd.f32 0.0, %v494
    %v496 = vpop.f32.mrb[0].mxu0
    %v497 = vadd.f32 0.0, %v496
    %v498 = vpop.f32.mrb[0].mxu0
    %v499 = vadd.f32 0.0, %v498
    %v500 = vpop.f32.mrb[0].mxu0
    %v501 = vadd.f32 0.0, %v500
    %502 = vdwg.mxu0
    %503 = vmatprep.subr.bf16.mxu0 %v335
    %504 = vmatpush1.bf16.msra.mxu0 %v334
    %505 = vmatprep.subr.bf16.mxu0 %v343
    %506 = vmatpush1.bf16.msra.mxu0 %v342
    %507 = vmatprep.subr.bf16.mxu0 %v351
    %508 = vmatpush1.bf16.msra.mxu0 %v350
    %509 = vmatprep.subr.bf16.mxu0 %v359
    %510 = vmatpush1.bf16.msra.mxu0 %v358
    %511 = vmatprep.subr.bf16.mxu0 %v367
    %512 = vmatpush1.bf16.msra.mxu0 %v366
    %513 = vmatprep.subr.bf16.mxu0 %v375
    %514 = vmatpush1.bf16.msra.mxu0 %v374
    %515 = vmatprep.subr.bf16.mxu0 %v383
    %516 = vmatpush1.bf16.msra.mxu0 %v382
    %517 = vmatprep.subr.bf16.mxu0 %v391
    %518 = vmatpush1.bf16.msra.mxu0 %v390
    %519 = vmatprep.subr.bf16.mxu0 0
    %520 = vmatpush1.bf16.msra.mxu0 0
    %521 = vmatprep.subr.bf16.mxu0 0
    %522 = vmatpush1.bf16.msra.mxu0 0
    %523 = vmatprep.subr.bf16.mxu0 0
    %524 = vmatpush1.bf16.msra.mxu0 0
    %525 = vmatprep.subr.bf16.mxu0 0
    %526 = vmatpush1.bf16.msra.mxu0 0
    %527 = vmatprep.subr.bf16.mxu0 0
    %528 = vmatpush1.bf16.msra.mxu0 0
    %529 = vmatprep.subr.bf16.mxu0 0
    %530 = vmatpush1.bf16.msra.mxu0 0
    %531 = vmatprep.subr.bf16.mxu0 0
    %532 = vmatpush1.bf16.msra.mxu0 0
    %533 = vmatprep.subr.bf16.mxu0 0
    %534 = vmatpush1.bf16.msra.mxu0 0
    %535 = vmatprep.mubr.bf16.mxu0 0
    %536 = vmatmul.mubr.bf16.gmra.mrb[0].mxu0 %v138
    %v537 = vpop.f32.mrb[0].mxu0
    %v538 = vadd.f32 0.0, %v537
    %v539 = vpop.f32.mrb[0].mxu0
    %v540 = vadd.f32 0.0, %v539
    %v541 = vpop.f32.mrb[0].mxu0
    %v542 = vadd.f32 0.0, %v541
    %v543 = vpop.f32.mrb[0].mxu0
    %v544 = vadd.f32 0.0, %v543
    %545 = vdwg.mxu0
    %546 = vmatprep.subr.bf16.mxu0 %v337
    %547 = vmatpush1.bf16.msra.mxu0 %v336
    %548 = vmatprep.subr.bf16.mxu0 %v345
    %549 = vmatpush1.bf16.msra.mxu0 %v344
    %550 = vmatprep.subr.bf16.mxu0 %v353
    %551 = vmatpush1.bf16.msra.mxu0 %v352
    %552 = vmatprep.subr.bf16.mxu0 %v361
    %553 = vmatpush1.bf16.msra.mxu0 %v360
    %554 = vmatprep.subr.bf16.mxu0 %v369
    %555 = vmatpush1.bf16.msra.mxu0 %v368
    %556 = vmatprep.subr.bf16.mxu0 %v377
    %557 = vmatpush1.bf16.msra.mxu0 %v376
    %558 = vmatprep.subr.bf16.mxu0 %v385
    %559 = vmatpush1.bf16.msra.mxu0 %v384
    %560 = vmatprep.subr.bf16.mxu0 %v393
    %561 = vmatpush1.bf16.msra.mxu0 %v392
    %562 = vmatprep.subr.bf16.mxu0 0
    %563 = vmatpush1.bf16.msra.mxu0 0
    %564 = vmatprep.subr.bf16.mxu0 0
    %565 = vmatpush1.bf16.msra.mxu0 0
    %566 = vmatprep.subr.bf16.mxu0 0
    %567 = vmatpush1.bf16.msra.mxu0 0
    %568 = vmatprep.subr.bf16.mxu0 0
    %569 = vmatpush1.bf16.msra.mxu0 0
    %570 = vmatprep.subr.bf16.mxu0 0
    %571 = vmatpush1.bf16.msra.mxu0 0
    %572 = vmatprep.subr.bf16.mxu0 0
    %573 = vmatpush1.bf16.msra.mxu0 0
    %574 = vmatprep.subr.bf16.mxu0 0
    %575 = vmatpush1.bf16.msra.mxu0 0
    %576 = vmatprep.subr.bf16.mxu0 0
    %577 = vmatpush1.bf16.msra.mxu0 0
    %578 = vmatprep.mubr.bf16.mxu0 0
    %579 = vmatmul.mubr.bf16.gmra.mrb[0].mxu0 %v138
    %v580 = vpop.f32.mrb[0].mxu0
    %v581 = vadd.f32 0.0, %v580
    %v582 = vpop.f32.mrb[0].mxu0
    %v583 = vadd.f32 0.0, %v582
    %v584 = vpop.f32.mrb[0].mxu0
    %v585 = vadd.f32 0.0, %v584
    %v586 = vpop.f32.mrb[0].mxu0
    %v587 = vadd.f32 0.0, %v586
    %588 = vdwg.mxu0
    %589 = vmatprep.subr.bf16.mxu0 %v339
    %590 = vmatpush1.bf16.msra.mxu0 %v338
    %591 = vmatprep.subr.bf16.mxu0 %v347
    %592 = vmatpush1.bf16.msra.mxu0 %v346
    %593 = vmatprep.subr.bf16.mxu0 %v355
    %594 = vmatpush1.bf16.msra.mxu0 %v354
    %595 = vmatprep.subr.bf16.mxu0 %v363
    %596 = vmatpush1.bf16.msra.mxu0 %v362
    %597 = vmatprep.subr.bf16.mxu0 %v371
    %598 = vmatpush1.bf16.msra.mxu0 %v370
    %599 = vmatprep.subr.bf16.mxu0 %v379
    %600 = vmatpush1.bf16.msra.mxu0 %v378
    %601 = vmatprep.subr.bf16.mxu0 %v387
    %602 = vmatpush1.bf16.msra.mxu0 %v386
    %603 = vmatprep.subr.bf16.mxu0 %v395
    %604 = vmatpush1.bf16.msra.mxu0 %v394
    %605 = vmatprep.subr.bf16.mxu0 0
    %606 = vmatpush1.bf16.msra.mxu0 0
    %607 = vmatprep.subr.bf16.mxu0 0
    %608 = vmatpush1.bf16.msra.mxu0 0
    %609 = vmatprep.subr.bf16.mxu0 0
    %610 = vmatpush1.bf16.msra.mxu0 0
    %611 = vmatprep.subr.bf16.mxu0 0
    %612 = vmatpush1.bf16.msra.mxu0 0
    %613 = vmatprep.subr.bf16.mxu0 0
    %614 = vmatpush1.bf16.msra.mxu0 0
    %615 = vmatprep.subr.bf16.mxu0 0
    %616 = vmatpush1.bf16.msra.mxu0 0
    %617 = vmatprep.subr.bf16.mxu0 0
    %618 = vmatpush1.bf16.msra.mxu0 0
    %619 = vmatprep.subr.bf16.mxu0 0
    %620 = vmatpush1.bf16.msra.mxu0 0
    %621 = vmatprep.mubr.bf16.mxu0 0
    %622 = vmatmul.mubr.bf16.gmra.mrb[0].mxu0 %v138
    %v623 = vpop.f32.mrb[0].mxu0
    %v624 = vadd.f32 0.0, %v623
    %v625 = vpop.f32.mrb[0].mxu0
    %v626 = vadd.f32 0.0, %v625
    %v627 = vpop.f32.mrb[0].mxu0
    %v628 = vadd.f32 0.0, %v627
    %v629 = vpop.f32.mrb[0].mxu0
    %v630 = vadd.f32 0.0, %v629
    %631 = vdwg.mxu0
    %v632 = vpack.c.bf16 %v499, %v495
    %v633 = vpack.c.bf16 %v501, %v497
    %v634 = vpack.c.bf16 %v542, %v538
    %v635 = vpack.c.bf16 %v544, %v540
    %v636 = vpack.c.bf16 %v585, %v581
    %v637 = vpack.c.bf16 %v587, %v583
    %v638 = vpack.c.bf16 %v628, %v624
    %v639 = vpack.c.bf16 %v630, %v626
    %v640 = vld [vmem:[%s2] sm:$0xff]
    %v642 = vcombine.high %v640, %v640
    %v644 = vunpack.c.l.s4 1966171168
    %v645 = vunpack.c.0.s8 %v644
    %v646 = vlaneseq
    %v647 = vshrl.u32 %v646, 7
    %v648 = vsub.s32 %v645, %v647
    %v649 = vrot.slane %v640, %v648
    %v651 = vunpack.c.l.s4 1966171168
    %v652 = vunpack.c.0.s8 %v651
    %v653 = vlaneseq
    %v654 = vshrl.u32 %v653, 7
    %v655 = vsub.s32 %v652, %v654
    %v656 = vrot.slane %v642, %v655
    %v657 = vcombine.high %v649, %v649
    %v658 = vcombine.high %v656, %v656
    %v660 = vunpack.c.l.s4 1966171168
    %v661 = vunpack.c.0.s8 %v660
    %v662 = vlaneseq
    %v663 = vshrl.u32 %v662, 7
    %v664 = vsub.s32 %v661, %v663
    %v665 = vrot.slane %v649, %v664
    %v667 = vunpack.c.l.s4 1966171168
    %v668 = vunpack.c.0.s8 %v667
    %v669 = vlaneseq
    %v670 = vshrl.u32 %v669, 7
    %v671 = vsub.s32 %v668, %v670
    %v672 = vrot.slane %v656, %v671
    %v674 = vunpack.c.l.s4 1966171168
    %v675 = vunpack.c.0.s8 %v674
    %v676 = vlaneseq
    %v677 = vshrl.u32 %v676, 7
    %v678 = vsub.s32 %v675, %v677
    %v679 = vrot.slane %v657, %v678
    %v681 = vunpack.c.l.s4 1966171168
    %v682 = vunpack.c.0.s8 %v681
    %v683 = vlaneseq
    %v684 = vshrl.u32 %v683, 7
    %v685 = vsub.s32 %v682, %v684
    %v686 = vrot.slane %v658, %v685
    %v687 = vcombine.high %v665, %v665
    %v688 = vcombine.high %v672, %v672
    %v689 = vcombine.high %v679, %v679
    %v690 = vcombine.high %v686, %v686
    %v692 = vpack.i.b16 %v665, %v665
    %v694 = vlaneseq
    %v695 = vshrl.u32 %v694, 7
    %v696 = vsub.s32 0, %v695
    %v697 = vrot.slane %v692, %v696
    %v699 = vpack.i.b16 %v679, %v679
    %v701 = vlaneseq
    %v702 = vshrl.u32 %v701, 7
    %v703 = vsub.s32 0, %v702
    %v704 = vrot.slane %v699, %v703
    %v706 = vpack.i.b16 %v687, %v687
    %v708 = vlaneseq
    %v709 = vshrl.u32 %v708, 7
    %v710 = vsub.s32 0, %v709
    %v711 = vrot.slane %v706, %v710
    %v713 = vpack.i.b16 %v689, %v689
    %v715 = vlaneseq
    %v716 = vshrl.u32 %v715, 7
    %v717 = vsub.s32 0, %v716
    %v718 = vrot.slane %v713, %v717
    %v720 = vpack.i.b16 %v672, %v672
    %v722 = vlaneseq
    %v723 = vshrl.u32 %v722, 7
    %v724 = vsub.s32 0, %v723
    %v725 = vrot.slane %v720, %v724
    %v727 = vpack.i.b16 %v686, %v686
    %v729 = vlaneseq
    %v730 = vshrl.u32 %v729, 7
    %v731 = vsub.s32 0, %v730
    %v732 = vrot.slane %v727, %v731
    %v734 = vpack.i.b16 %v688, %v688
    %v736 = vlaneseq
    %v737 = vshrl.u32 %v736, 7
    %v738 = vsub.s32 0, %v737
    %v739 = vrot.slane %v734, %v738
    %v741 = vpack.i.b16 %v690, %v690
    %v743 = vlaneseq
    %v744 = vshrl.u32 %v743, 7
    %v745 = vsub.s32 0, %v744
    %v746 = vrot.slane %v741, %v745
    %v747 = vadd.bf16 %v632, %v697
    %v748 = vadd.bf16 %v633, %v704
    %v749 = vadd.bf16 %v634, %v711
    %v750 = vadd.bf16 %v635, %v718
    %v751 = vadd.bf16 %v636, %v725
    %v752 = vadd.bf16 %v637, %v732
    %v753 = vadd.bf16 %v638, %v739
    %v754 = vadd.bf16 %v639, %v746
    %v755 = vmax.bf16 %v747, 0
    %v756 = vmax.bf16 %v748, 0
    %v757 = vmax.bf16 %v749, 0
    %v758 = vmax.bf16 %v750, 0
    %v759 = vmax.bf16 %v751, 0
    %v760 = vmax.bf16 %v752, 0
    %v761 = vmax.bf16 %v753, 0
    %v762 = vmax.bf16 %v754, 0
    %v763 = vld [vmem:[#allocation4] sm:$0xff]
    %v764 = vld [vmem:[#allocation4 + $0x8] sm:$0xff]
    %v765 = vld [vmem:[#allocation4 + $0x10] sm:$0xff]
    %v766 = vld [vmem:[#allocation4 + $0x18] sm:$0xff]
    %v767 = vld [vmem:[#allocation4 + $0x20] sm:$0xff]
    %v768 = vld [vmem:[#allocation4 + $0x28] sm:$0xff]
    %v769 = vld [vmem:[#allocation4 + $0x30] sm:$0xff]
    %v770 = vld [vmem:[#allocation4 + $0x38] sm:$0xff]
    %v771 = vld [vmem:[#allocation4 + $0x40] sm:$0xff]
    %v772 = vld [vmem:[#allocation4 + $0x48] sm:$0xff]
    %v773 = vld [vmem:[#allocation4 + $0x50] sm:$0xff]
    %v774 = vld [vmem:[#allocation4 + $0x58] sm:$0xff]
    %v775 = vld [vmem:[#allocation4 + $0x60] sm:$0xff]
    %v776 = vld [vmem:[#allocation4 + $0x68] sm:$0xff]
    %v777 = vld [vmem:[#allocation4 + $0x70] sm:$0xff]
    %v778 = vld [vmem:[#allocation4 + $0x78] sm:$0xff]
    %v779 = vld [vmem:[#allocation4 + $0x80] sm:$0xff]
    %v780 = vld [vmem:[#allocation4 + $0x88] sm:$0xff]
    %v781 = vld [vmem:[#allocation4 + $0x90] sm:$0xff]
    %v782 = vld [vmem:[#allocation4 + $0x98] sm:$0xff]
    %v783 = vld [vmem:[#allocation4 + $0xa0] sm:$0xff]
    %v784 = vld [vmem:[#allocation4 + $0xa8] sm:$0xff]
    %v785 = vld [vmem:[#allocation4 + $0xb0] sm:$0xff]
    %v786 = vld [vmem:[#allocation4 + $0xb8] sm:$0xff]
    %v787 = vld [vmem:[#allocation4 + $0xc0] sm:$0xff]
    %v788 = vld [vmem:[#allocation4 + $0xc8] sm:$0xff]
    %v789 = vld [vmem:[#allocation4 + $0xd0] sm:$0xff]
    %v790 = vld [vmem:[#allocation4 + $0xd8] sm:$0xff]
    %v791 = vld [vmem:[#allocation4 + $0xe0] sm:$0xff]
    %v792 = vld [vmem:[#allocation4 + $0xe8] sm:$0xff]
    %v793 = vld [vmem:[#allocation4 + $0xf0] sm:$0xff]
    %v794 = vld [vmem:[#allocation4 + $0xf8] sm:$0xff]
    %v795 = vld [vmem:[#allocation4 + $0x100] sm:$0xff]
    %v796 = vld [vmem:[#allocation4 + $0x108] sm:$0xff]
    %v797 = vld [vmem:[#allocation4 + $0x110] sm:$0xff]
    %v798 = vld [vmem:[#allocation4 + $0x118] sm:$0xff]
    %v799 = vld [vmem:[#allocation4 + $0x120] sm:$0xff]
    %v800 = vld [vmem:[#allocation4 + $0x128] sm:$0xff]
    %v801 = vld [vmem:[#allocation4 + $0x130] sm:$0xff]
    %v802 = vld [vmem:[#allocation4 + $0x138] sm:$0xff]
    %v803 = vld [vmem:[#allocation4 + $0x140] sm:$0xff]
    %v804 = vld [vmem:[#allocation4 + $0x148] sm:$0xff]
    %v805 = vld [vmem:[#allocation4 + $0x150] sm:$0xff]
    %v806 = vld [vmem:[#allocation4 + $0x158] sm:$0xff]
    %v807 = vld [vmem:[#allocation4 + $0x160] sm:$0xff]
    %v808 = vld [vmem:[#allocation4 + $0x168] sm:$0xff]
    %v809 = vld [vmem:[#allocation4 + $0x170] sm:$0xff]
    %v810 = vld [vmem:[#allocation4 + $0x178] sm:$0xff]
    %v811 = vld [vmem:[#allocation4 + $0x180] sm:$0xff]
    %v812 = vld [vmem:[#allocation4 + $0x188] sm:$0xff]
    %v813 = vld [vmem:[#allocation4 + $0x190] sm:$0xff]
    %v814 = vld [vmem:[#allocation4 + $0x198] sm:$0xff]
    %v815 = vld [vmem:[#allocation4 + $0x1a0] sm:$0xff]
    %v816 = vld [vmem:[#allocation4 + $0x1a8] sm:$0xff]
    %v817 = vld [vmem:[#allocation4 + $0x1b0] sm:$0xff]
    %v818 = vld [vmem:[#allocation4 + $0x1b8] sm:$0xff]
    %v819 = vld [vmem:[#allocation4 + $0x1c0] sm:$0xff]
    %v820 = vld [vmem:[#allocation4 + $0x1c8] sm:$0xff]
    %v821 = vld [vmem:[#allocation4 + $0x1d0] sm:$0xff]
    %v822 = vld [vmem:[#allocation4 + $0x1d8] sm:$0xff]
    %v823 = vld [vmem:[#allocation4 + $0x1e0] sm:$0xff]
    %v824 = vld [vmem:[#allocation4 + $0x1e8] sm:$0xff]
    %v825 = vld [vmem:[#allocation4 + $0x1f0] sm:$0xff]
    %v826 = vld [vmem:[#allocation4 + $0x1f8] sm:$0xff]
    %v827 = vld [vmem:[#allocation4 + $0x200] sm:$0xff]
    %v828 = vld [vmem:[#allocation4 + $0x208] sm:$0xff]
    %v829 = vld [vmem:[#allocation4 + $0x210] sm:$0xff]
    %v830 = vld [vmem:[#allocation4 + $0x218] sm:$0xff]
    %v831 = vld [vmem:[#allocation4 + $0x220] sm:$0xff]
    %v832 = vld [vmem:[#allocation4 + $0x228] sm:$0xff]
    %v833 = vld [vmem:[#allocation4 + $0x230] sm:$0xff]
    %v834 = vld [vmem:[#allocation4 + $0x238] sm:$0xff]
    %v835 = vld [vmem:[#allocation4 + $0x240] sm:$0xff]
    %v836 = vld [vmem:[#allocation4 + $0x248] sm:$0xff]
    %v837 = vld [vmem:[#allocation4 + $0x250] sm:$0xff]
    %v838 = vld [vmem:[#allocation4 + $0x258] sm:$0xff]
    %v839 = vld [vmem:[#allocation4 + $0x260] sm:$0xff]
    %v840 = vld [vmem:[#allocation4 + $0x268] sm:$0xff]
    %v841 = vld [vmem:[#allocation4 + $0x270] sm:$0xff]
    %v842 = vld [vmem:[#allocation4 + $0x278] sm:$0xff]
    %v843 = vld [vmem:[#allocation4 + $0x280] sm:$0xff]
    %v844 = vld [vmem:[#allocation4 + $0x288] sm:$0xff]
    %v845 = vld [vmem:[#allocation4 + $0x290] sm:$0xff]
    %v846 = vld [vmem:[#allocation4 + $0x298] sm:$0xff]
    %v847 = vld [vmem:[#allocation4 + $0x2a0] sm:$0xff]
    %v848 = vld [vmem:[#allocation4 + $0x2a8] sm:$0xff]
    %v849 = vld [vmem:[#allocation4 + $0x2b0] sm:$0xff]
    %v850 = vld [vmem:[#allocation4 + $0x2b8] sm:$0xff]
    %v851 = vld [vmem:[#allocation4 + $0x2c0] sm:$0xff]
    %v852 = vld [vmem:[#allocation4 + $0x2c8] sm:$0xff]
    %v853 = vld [vmem:[#allocation4 + $0x2d0] sm:$0xff]
    %v854 = vld [vmem:[#allocation4 + $0x2d8] sm:$0xff]
    %v855 = vld [vmem:[#allocation4 + $0x2e0] sm:$0xff]
    %v856 = vld [vmem:[#allocation4 + $0x2e8] sm:$0xff]
    %v857 = vld [vmem:[#allocation4 + $0x2f0] sm:$0xff]
    %v858 = vld [vmem:[#allocation4 + $0x2f8] sm:$0xff]
    %v859 = vld [vmem:[#allocation4 + $0x300] sm:$0xff]
    %v860 = vld [vmem:[#allocation4 + $0x308] sm:$0xff]
    %v861 = vld [vmem:[#allocation4 + $0x310] sm:$0xff]
    %v862 = vld [vmem:[#allocation4 + $0x318] sm:$0xff]
    %v863 = vld [vmem:[#allocation4 + $0x320] sm:$0xff]
    %v864 = vld [vmem:[#allocation4 + $0x328] sm:$0xff]
    %v865 = vld [vmem:[#allocation4 + $0x330] sm:$0xff]
    %v866 = vld [vmem:[#allocation4 + $0x338] sm:$0xff]
    %v867 = vld [vmem:[#allocation4 + $0x340] sm:$0xff]
    %v868 = vld [vmem:[#allocation4 + $0x348] sm:$0xff]
    %v869 = vld [vmem:[#allocation4 + $0x350] sm:$0xff]
    %v870 = vld [vmem:[#allocation4 + $0x358] sm:$0xff]
    %v871 = vld [vmem:[#allocation4 + $0x360] sm:$0xff]
    %v872 = vld [vmem:[#allocation4 + $0x368] sm:$0xff]
    %v873 = vld [vmem:[#allocation4 + $0x370] sm:$0xff]
    %v874 = vld [vmem:[#allocation4 + $0x378] sm:$0xff]
    %v875 = vld [vmem:[#allocation4 + $0x380] sm:$0xff]
    %v876 = vld [vmem:[#allocation4 + $0x388] sm:$0xff]
    %v877 = vld [vmem:[#allocation4 + $0x390] sm:$0xff]
    %v878 = vld [vmem:[#allocation4 + $0x398] sm:$0xff]
    %v879 = vld [vmem:[#allocation4 + $0x3a0] sm:$0xff]
    %v880 = vld [vmem:[#allocation4 + $0x3a8] sm:$0xff]
    %v881 = vld [vmem:[#allocation4 + $0x3b0] sm:$0xff]
    %v882 = vld [vmem:[#allocation4 + $0x3b8] sm:$0xff]
    %v883 = vld [vmem:[#allocation4 + $0x3c0] sm:$0xff]
    %v884 = vld [vmem:[#allocation4 + $0x3c8] sm:$0xff]
    %v885 = vld [vmem:[#allocation4 + $0x3d0] sm:$0xff]
    %v886 = vld [vmem:[#allocation4 + $0x3d8] sm:$0xff]
    %v887 = vld [vmem:[#allocation4 + $0x3e0] sm:$0xff]
    %v888 = vld [vmem:[#allocation4 + $0x3e8] sm:$0xff]
    %v889 = vld [vmem:[#allocation4 + $0x3f0] sm:$0xff]
    %v890 = vld [vmem:[#allocation4 + $0x3f8] sm:$0xff]
    %v891 = vld [vmem:[#allocation4 + $0x400] sm:$0xff]
    %v892 = vld [vmem:[#allocation4 + $0x408] sm:$0xff]
    %v893 = vld [vmem:[#allocation4 + $0x410] sm:$0xff]
    %v894 = vld [vmem:[#allocation4 + $0x418] sm:$0xff]
    %v895 = vld [vmem:[#allocation4 + $0x420] sm:$0xff]
    %v896 = vld [vmem:[#allocation4 + $0x428] sm:$0xff]
    %v897 = vld [vmem:[#allocation4 + $0x430] sm:$0xff]
    %v898 = vld [vmem:[#allocation4 + $0x438] sm:$0xff]
    %v899 = vld [vmem:[#allocation4 + $0x440] sm:$0xff]
    %v900 = vld [vmem:[#allocation4 + $0x448] sm:$0xff]
    %v901 = vld [vmem:[#allocation4 + $0x450] sm:$0xff]
    %v902 = vld [vmem:[#allocation4 + $0x458] sm:$0xff]
    %v903 = vld [vmem:[#allocation4 + $0x460] sm:$0xff]
    %v904 = vld [vmem:[#allocation4 + $0x468] sm:$0xff]
    %v905 = vld [vmem:[#allocation4 + $0x470] sm:$0xff]
    %v906 = vld [vmem:[#allocation4 + $0x478] sm:$0xff]
    %v907 = vld [vmem:[#allocation4 + $0x480] sm:$0xff]
    %v908 = vld [vmem:[#allocation4 + $0x488] sm:$0xff]
    %v909 = vld [vmem:[#allocation4 + $0x490] sm:$0xff]
    %v910 = vld [vmem:[#allocation4 + $0x498] sm:$0xff]
    %v911 = vld [vmem:[#allocation4 + $0x4a0] sm:$0xff]
    %v912 = vld [vmem:[#allocation4 + $0x4a8] sm:$0xff]
    %v913 = vld [vmem:[#allocation4 + $0x4b0] sm:$0xff]
    %v914 = vld [vmem:[#allocation4 + $0x4b8] sm:$0xff]
    %v915 = vld [vmem:[#allocation4 + $0x4c0] sm:$0xff]
    %v916 = vld [vmem:[#allocation4 + $0x4c8] sm:$0xff]
    %v917 = vld [vmem:[#allocation4 + $0x4d0] sm:$0xff]
    %v918 = vld [vmem:[#allocation4 + $0x4d8] sm:$0xff]
    %v919 = vld [vmem:[#allocation4 + $0x4e0] sm:$0xff]
    %v920 = vld [vmem:[#allocation4 + $0x4e8] sm:$0xff]
    %v921 = vld [vmem:[#allocation4 + $0x4f0] sm:$0xff]
    %v922 = vld [vmem:[#allocation4 + $0x4f8] sm:$0xff]
    %v923 = vld [vmem:[#allocation4 + $0x500] sm:$0xff]
    %v924 = vld [vmem:[#allocation4 + $0x508] sm:$0xff]
    %v925 = vld [vmem:[#allocation4 + $0x510] sm:$0xff]
    %v926 = vld [vmem:[#allocation4 + $0x518] sm:$0xff]
    %v927 = vld [vmem:[#allocation4 + $0x520] sm:$0xff]
    %v928 = vld [vmem:[#allocation4 + $0x528] sm:$0xff]
    %v929 = vld [vmem:[#allocation4 + $0x530] sm:$0xff]
    %v930 = vld [vmem:[#allocation4 + $0x538] sm:$0xff]
    %v931 = vld [vmem:[#allocation4 + $0x540] sm:$0xff]
    %v932 = vld [vmem:[#allocation4 + $0x548] sm:$0xff]
    %v933 = vld [vmem:[#allocation4 + $0x550] sm:$0xff]
    %v934 = vld [vmem:[#allocation4 + $0x558] sm:$0xff]
    %v935 = vld [vmem:[#allocation4 + $0x560] sm:$0xff]
    %v936 = vld [vmem:[#allocation4 + $0x568] sm:$0xff]
    %v937 = vld [vmem:[#allocation4 + $0x570] sm:$0xff]
    %v938 = vld [vmem:[#allocation4 + $0x578] sm:$0xff]
    %v939 = vld [vmem:[#allocation4 + $0x580] sm:$0xff]
    %v940 = vld [vmem:[#allocation4 + $0x588] sm:$0xff]
    %v941 = vld [vmem:[#allocation4 + $0x590] sm:$0xff]
    %v942 = vld [vmem:[#allocation4 + $0x598] sm:$0xff]
    %v943 = vld [vmem:[#allocation4 + $0x5a0] sm:$0xff]
    %v944 = vld [vmem:[#allocation4 + $0x5a8] sm:$0xff]
    %v945 = vld [vmem:[#allocation4 + $0x5b0] sm:$0xff]
    %v946 = vld [vmem:[#allocation4 + $0x5b8] sm:$0xff]
    %v947 = vld [vmem:[#allocation4 + $0x5c0] sm:$0xff]
    %v948 = vld [vmem:[#allocation4 + $0x5c8] sm:$0xff]
    %v949 = vld [vmem:[#allocation4 + $0x5d0] sm:$0xff]
    %v950 = vld [vmem:[#allocation4 + $0x5d8] sm:$0xff]
    %v951 = vld [vmem:[#allocation4 + $0x5e0] sm:$0xff]
    %v952 = vld [vmem:[#allocation4 + $0x5e8] sm:$0xff]
    %v953 = vld [vmem:[#allocation4 + $0x5f0] sm:$0xff]
    %v954 = vld [vmem:[#allocation4 + $0x5f8] sm:$0xff]
    %v955 = vld [vmem:[#allocation4 + $0x600] sm:$0xff]
    %v956 = vld [vmem:[#allocation4 + $0x608] sm:$0xff]
    %v957 = vld [vmem:[#allocation4 + $0x610] sm:$0xff]
    %v958 = vld [vmem:[#allocation4 + $0x618] sm:$0xff]
    %v959 = vld [vmem:[#allocation4 + $0x620] sm:$0xff]
    %v960 = vld [vmem:[#allocation4 + $0x628] sm:$0xff]
    %v961 = vld [vmem:[#allocation4 + $0x630] sm:$0xff]
    %v962 = vld [vmem:[#allocation4 + $0x638] sm:$0xff]
    %v963 = vld [vmem:[#allocation4 + $0x640] sm:$0xff]
    %v964 = vld [vmem:[#allocation4 + $0x648] sm:$0xff]
    %v965 = vld [vmem:[#allocation4 + $0x650] sm:$0xff]
    %v966 = vld [vmem:[#allocation4 + $0x658] sm:$0xff]
    %v967 = vld [vmem:[#allocation4 + $0x660] sm:$0xff]
    %v968 = vld [vmem:[#allocation4 + $0x668] sm:$0xff]
    %v969 = vld [vmem:[#allocation4 + $0x670] sm:$0xff]
    %v970 = vld [vmem:[#allocation4 + $0x678] sm:$0xff]
    %v971 = vld [vmem:[#allocation4 + $0x680] sm:$0xff]
    %v972 = vld [vmem:[#allocation4 + $0x688] sm:$0xff]
    %v973 = vld [vmem:[#allocation4 + $0x690] sm:$0xff]
    %v974 = vld [vmem:[#allocation4 + $0x698] sm:$0xff]
    %v975 = vld [vmem:[#allocation4 + $0x6a0] sm:$0xff]
    %v976 = vld [vmem:[#allocation4 + $0x6a8] sm:$0xff]
    %v977 = vld [vmem:[#allocation4 + $0x6b0] sm:$0xff]
    %v978 = vld [vmem:[#allocation4 + $0x6b8] sm:$0xff]
    %v979 = vld [vmem:[#allocation4 + $0x6c0] sm:$0xff]
    %v980 = vld [vmem:[#allocation4 + $0x6c8] sm:$0xff]
    %v981 = vld [vmem:[#allocation4 + $0x6d0] sm:$0xff]
    %v982 = vld [vmem:[#allocation4 + $0x6d8] sm:$0xff]
    %v983 = vld [vmem:[#allocation4 + $0x6e0] sm:$0xff]
    %v984 = vld [vmem:[#allocation4 + $0x6e8] sm:$0xff]
    %v985 = vld [vmem:[#allocation4 + $0x6f0] sm:$0xff]
    %v986 = vld [vmem:[#allocation4 + $0x6f8] sm:$0xff]
    %v987 = vld [vmem:[#allocation4 + $0x700] sm:$0xff]
    %v988 = vld [vmem:[#allocation4 + $0x708] sm:$0xff]
    %v989 = vld [vmem:[#allocation4 + $0x710] sm:$0xff]
    %v990 = vld [vmem:[#allocation4 + $0x718] sm:$0xff]
    %v991 = vld [vmem:[#allocation4 + $0x720] sm:$0xff]
    %v992 = vld [vmem:[#allocation4 + $0x728] sm:$0xff]
    %v993 = vld [vmem:[#allocation4 + $0x730] sm:$0xff]
    %v994 = vld [vmem:[#allocation4 + $0x738] sm:$0xff]
    %v995 = vld [vmem:[#allocation4 + $0x740] sm:$0xff]
    %v996 = vld [vmem:[#allocation4 + $0x748] sm:$0xff]
    %v997 = vld [vmem:[#allocation4 + $0x750] sm:$0xff]
    %v998 = vld [vmem:[#allocation4 + $0x758] sm:$0xff]
    %v999 = vld [vmem:[#allocation4 + $0x760] sm:$0xff]
    %v1000 = vld [vmem:[#allocation4 + $0x768] sm:$0xff]
    %v1001 = vld [vmem:[#allocation4 + $0x770] sm:$0xff]
    %v1002 = vld [vmem:[#allocation4 + $0x778] sm:$0xff]
    %v1003 = vld [vmem:[#allocation4 + $0x780] sm:$0xff]
    %v1004 = vld [vmem:[#allocation4 + $0x788] sm:$0xff]
    %v1005 = vld [vmem:[#allocation4 + $0x790] sm:$0xff]
    %v1006 = vld [vmem:[#allocation4 + $0x798] sm:$0xff]
    %v1007 = vld [vmem:[#allocation4 + $0x7a0] sm:$0xff]
    %v1008 = vld [vmem:[#allocation4 + $0x7a8] sm:$0xff]
    %v1009 = vld [vmem:[#allocation4 + $0x7b0] sm:$0xff]
    %v1010 = vld [vmem:[#allocation4 + $0x7b8] sm:$0xff]
    %v1011 = vld [vmem:[#allocation4 + $0x7c0] sm:$0xff]
    %v1012 = vld [vmem:[#allocation4 + $0x7c8] sm:$0xff]
    %v1013 = vld [vmem:[#allocation4 + $0x7d0] sm:$0xff]
    %v1014 = vld [vmem:[#allocation4 + $0x7d8] sm:$0xff]
    %v1015 = vld [vmem:[#allocation4 + $0x7e0] sm:$0xff]
    %v1016 = vld [vmem:[#allocation4 + $0x7e8] sm:$0xff]
    %v1017 = vld [vmem:[#allocation4 + $0x7f0] sm:$0xff]
    %v1018 = vld [vmem:[#allocation4 + $0x7f8] sm:$0xff]
    %v1275 = vunpack.c.l.b16 %v763
    %v1276 = vunpack.c.h.b16 %v763
    %v1277 = vunpack.c.l.b16 %v764
    %v1278 = vunpack.c.h.b16 %v764
    %v1279 = vunpack.c.l.b16 %v765
    %v1280 = vunpack.c.h.b16 %v765
    %v1281 = vunpack.c.l.b16 %v766
    %v1282 = vunpack.c.h.b16 %v766
    %v1283 = vunpack.c.l.b16 %v767
    %v1284 = vunpack.c.h.b16 %v767
    %v1285 = vunpack.c.l.b16 %v768
    %v1286 = vunpack.c.h.b16 %v768
    %v1287 = vunpack.c.l.b16 %v769
    %v1288 = vunpack.c.h.b16 %v769
    %v1289 = vunpack.c.l.b16 %v770
    %v1290 = vunpack.c.h.b16 %v770
    %v1291 = vunpack.c.l.b16 %v771
    %v1292 = vunpack.c.h.b16 %v771
    %v1293 = vunpack.c.l.b16 %v772
    %v1294 = vunpack.c.h.b16 %v772
    %v1295 = vunpack.c.l.b16 %v773
    %v1296 = vunpack.c.h.b16 %v773
    %v1297 = vunpack.c.l.b16 %v774
    %v1298 = vunpack.c.h.b16 %v774
    %v1299 = vunpack.c.l.b16 %v775
    %v1300 = vunpack.c.h.b16 %v775
    %v1301 = vunpack.c.l.b16 %v776
    %v1302 = vunpack.c.h.b16 %v776
    %v1303 = vunpack.c.l.b16 %v777
    %v1304 = vunpack.c.h.b16 %v777
    %v1305 = vunpack.c.l.b16 %v778
    %v1306 = vunpack.c.h.b16 %v778
    %v1307 = vunpack.c.l.b16 %v779
    %v1308 = vunpack.c.h.b16 %v779
    %v1309 = vunpack.c.l.b16 %v780
    %v1310 = vunpack.c.h.b16 %v780
    %v1311 = vunpack.c.l.b16 %v781
    %v1312 = vunpack.c.h.b16 %v781
    %v1313 = vunpack.c.l.b16 %v782
    %v1314 = vunpack.c.h.b16 %v782
    %v1315 = vunpack.c.l.b16 %v783
    %v1316 = vunpack.c.h.b16 %v783
    %v1317 = vunpack.c.l.b16 %v784
    %v1318 = vunpack.c.h.b16 %v784
    %v1319 = vunpack.c.l.b16 %v785
    %v1320 = vunpack.c.h.b16 %v785
    %v1321 = vunpack.c.l.b16 %v786
    %v1322 = vunpack.c.h.b16 %v786
    %v1323 = vunpack.c.l.b16 %v787
    %v1324 = vunpack.c.h.b16 %v787
    %v1325 = vunpack.c.l.b16 %v788
    %v1326 = vunpack.c.h.b16 %v788
    %v1327 = vunpack.c.l.b16 %v789
    %v1328 = vunpack.c.h.b16 %v789
    %v1329 = vunpack.c.l.b16 %v790
    %v1330 = vunpack.c.h.b16 %v790
    %v1331 = vunpack.c.l.b16 %v791
    %v1332 = vunpack.c.h.b16 %v791
    %v1333 = vunpack.c.l.b16 %v792
    %v1334 = vunpack.c.h.b16 %v792
    %v1335 = vunpack.c.l.b16 %v793
    %v1336 = vunpack.c.h.b16 %v793
    %v1337 = vunpack.c.l.b16 %v794
    %v1338 = vunpack.c.h.b16 %v794
    %v1339 = vunpack.c.l.b16 %v795
    %v1340 = vunpack.c.h.b16 %v795
    %v1341 = vunpack.c.l.b16 %v796
    %v1342 = vunpack.c.h.b16 %v796
    %v1343 = vunpack.c.l.b16 %v797
    %v1344 = vunpack.c.h.b16 %v797
    %v1345 = vunpack.c.l.b16 %v798
    %v1346 = vunpack.c.h.b16 %v798
    %v1347 = vunpack.c.l.b16 %v799
    %v1348 = vunpack.c.h.b16 %v799
    %v1349 = vunpack.c.l.b16 %v800
    %v1350 = vunpack.c.h.b16 %v800
    %v1351 = vunpack.c.l.b16 %v801
    %v1352 = vunpack.c.h.b16 %v801
    %v1353 = vunpack.c.l.b16 %v802
    %v1354 = vunpack.c.h.b16 %v802
    %v1355 = vunpack.c.l.b16 %v803
    %v1356 = vunpack.c.h.b16 %v803
    %v1357 = vunpack.c.l.b16 %v804
    %v1358 = vunpack.c.h.b16 %v804
    %v1359 = vunpack.c.l.b16 %v805
    %v1360 = vunpack.c.h.b16 %v805
    %v1361 = vunpack.c.l.b16 %v806
    %v1362 = vunpack.c.h.b16 %v806
    %v1363 = vunpack.c.l.b16 %v807
    %v1364 = vunpack.c.h.b16 %v807
    %v1365 = vunpack.c.l.b16 %v808
    %v1366 = vunpack.c.h.b16 %v808
    %v1367 = vunpack.c.l.b16 %v809
    %v1368 = vunpack.c.h.b16 %v809
    %v1369 = vunpack.c.l.b16 %v810
    %v1370 = vunpack.c.h.b16 %v810
    %v1371 = vunpack.c.l.b16 %v811
    %v1372 = vunpack.c.h.b16 %v811
    %v1373 = vunpack.c.l.b16 %v812
    %v1374 = vunpack.c.h.b16 %v812
    %v1375 = vunpack.c.l.b16 %v813
    %v1376 = vunpack.c.h.b16 %v813
    %v1377 = vunpack.c.l.b16 %v814
    %v1378 = vunpack.c.h.b16 %v814
    %v1379 = vunpack.c.l.b16 %v815
    %v1380 = vunpack.c.h.b16 %v815
    %v1381 = vunpack.c.l.b16 %v816
    %v1382 = vunpack.c.h.b16 %v816
    %v1383 = vunpack.c.l.b16 %v817
    %v1384 = vunpack.c.h.b16 %v817
    %v1385 = vunpack.c.l.b16 %v818
    %v1386 = vunpack.c.h.b16 %v818
    %v1387 = vunpack.c.l.b16 %v819
    %v1388 = vunpack.c.h.b16 %v819
    %v1389 = vunpack.c.l.b16 %v820
    %v1390 = vunpack.c.h.b16 %v820
    %v1391 = vunpack.c.l.b16 %v821
    %v1392 = vunpack.c.h.b16 %v821
    %v1393 = vunpack.c.l.b16 %v822
    %v1394 = vunpack.c.h.b16 %v822
    %v1395 = vunpack.c.l.b16 %v823
    %v1396 = vunpack.c.h.b16 %v823
    %v1397 = vunpack.c.l.b16 %v824
    %v1398 = vunpack.c.h.b16 %v824
    %v1399 = vunpack.c.l.b16 %v825
    %v1400 = vunpack.c.h.b16 %v825
    %v1401 = vunpack.c.l.b16 %v826
    %v1402 = vunpack.c.h.b16 %v826
    %v1403 = vunpack.c.l.b16 %v827
    %v1404 = vunpack.c.h.b16 %v827
    %v1405 = vunpack.c.l.b16 %v828
    %v1406 = vunpack.c.h.b16 %v828
    %v1407 = vunpack.c.l.b16 %v829
    %v1408 = vunpack.c.h.b16 %v829
    %v1409 = vunpack.c.l.b16 %v830
    %v1410 = vunpack.c.h.b16 %v830
    %v1411 = vunpack.c.l.b16 %v831
    %v1412 = vunpack.c.h.b16 %v831
    %v1413 = vunpack.c.l.b16 %v832
    %v1414 = vunpack.c.h.b16 %v832
    %v1415 = vunpack.c.l.b16 %v833
    %v1416 = vunpack.c.h.b16 %v833
    %v1417 = vunpack.c.l.b16 %v834
    %v1418 = vunpack.c.h.b16 %v834
    %v1419 = vunpack.c.l.b16 %v835
    %v1420 = vunpack.c.h.b16 %v835
    %v1421 = vunpack.c.l.b16 %v836
    %v1422 = vunpack.c.h.b16 %v836
    %v1423 = vunpack.c.l.b16 %v837
    %v1424 = vunpack.c.h.b16 %v837
    %v1425 = vunpack.c.l.b16 %v838
    %v1426 = vunpack.c.h.b16 %v838
    %v1427 = vunpack.c.l.b16 %v839
    %v1428 = vunpack.c.h.b16 %v839
    %v1429 = vunpack.c.l.b16 %v840
    %v1430 = vunpack.c.h.b16 %v840
    %v1431 = vunpack.c.l.b16 %v841
    %v1432 = vunpack.c.h.b16 %v841
    %v1433 = vunpack.c.l.b16 %v842
    %v1434 = vunpack.c.h.b16 %v842
    %v1435 = vunpack.c.l.b16 %v843
    %v1436 = vunpack.c.h.b16 %v843
    %v1437 = vunpack.c.l.b16 %v844
    %v1438 = vunpack.c.h.b16 %v844
    %v1439 = vunpack.c.l.b16 %v845
    %v1440 = vunpack.c.h.b16 %v845
    %v1441 = vunpack.c.l.b16 %v846
    %v1442 = vunpack.c.h.b16 %v846
    %v1443 = vunpack.c.l.b16 %v847
    %v1444 = vunpack.c.h.b16 %v847
    %v1445 = vunpack.c.l.b16 %v848
    %v1446 = vunpack.c.h.b16 %v848
    %v1447 = vunpack.c.l.b16 %v849
    %v1448 = vunpack.c.h.b16 %v849
    %v1449 = vunpack.c.l.b16 %v850
    %v1450 = vunpack.c.h.b16 %v850
    %v1451 = vunpack.c.l.b16 %v851
    %v1452 = vunpack.c.h.b16 %v851
    %v1453 = vunpack.c.l.b16 %v852
    %v1454 = vunpack.c.h.b16 %v852
    %v1455 = vunpack.c.l.b16 %v853
    %v1456 = vunpack.c.h.b16 %v853
    %v1457 = vunpack.c.l.b16 %v854
    %v1458 = vunpack.c.h.b16 %v854
    %v1459 = vunpack.c.l.b16 %v855
    %v1460 = vunpack.c.h.b16 %v855
    %v1461 = vunpack.c.l.b16 %v856
    %v1462 = vunpack.c.h.b16 %v856
    %v1463 = vunpack.c.l.b16 %v857
    %v1464 = vunpack.c.h.b16 %v857
    %v1465 = vunpack.c.l.b16 %v858
    %v1466 = vunpack.c.h.b16 %v858
    %v1467 = vunpack.c.l.b16 %v859
    %v1468 = vunpack.c.h.b16 %v859
    %v1469 = vunpack.c.l.b16 %v860
    %v1470 = vunpack.c.h.b16 %v860
    %v1471 = vunpack.c.l.b16 %v861
    %v1472 = vunpack.c.h.b16 %v861
    %v1473 = vunpack.c.l.b16 %v862
    %v1474 = vunpack.c.h.b16 %v862
    %v1475 = vunpack.c.l.b16 %v863
    %v1476 = vunpack.c.h.b16 %v863
    %v1477 = vunpack.c.l.b16 %v864
    %v1478 = vunpack.c.h.b16 %v864
    %v1479 = vunpack.c.l.b16 %v865
    %v1480 = vunpack.c.h.b16 %v865
    %v1481 = vunpack.c.l.b16 %v866
    %v1482 = vunpack.c.h.b16 %v866
    %v1483 = vunpack.c.l.b16 %v867
    %v1484 = vunpack.c.h.b16 %v867
    %v1485 = vunpack.c.l.b16 %v868
    %v1486 = vunpack.c.h.b16 %v868
    %v1487 = vunpack.c.l.b16 %v869
    %v1488 = vunpack.c.h.b16 %v869
    %v1489 = vunpack.c.l.b16 %v870
    %v1490 = vunpack.c.h.b16 %v870
    %v1491 = vunpack.c.l.b16 %v871
    %v1492 = vunpack.c.h.b16 %v871
    %v1493 = vunpack.c.l.b16 %v872
    %v1494 = vunpack.c.h.b16 %v872
    %v1495 = vunpack.c.l.b16 %v873
    %v1496 = vunpack.c.h.b16 %v873
    %v1497 = vunpack.c.l.b16 %v874
    %v1498 = vunpack.c.h.b16 %v874
    %v1499 = vunpack.c.l.b16 %v875
    %v1500 = vunpack.c.h.b16 %v875
    %v1501 = vunpack.c.l.b16 %v876
    %v1502 = vunpack.c.h.b16 %v876
    %v1503 = vunpack.c.l.b16 %v877
    %v1504 = vunpack.c.h.b16 %v877
    %v1505 = vunpack.c.l.b16 %v878
    %v1506 = vunpack.c.h.b16 %v878
    %v1507 = vunpack.c.l.b16 %v879
    %v1508 = vunpack.c.h.b16 %v879
    %v1509 = vunpack.c.l.b16 %v880
    %v1510 = vunpack.c.h.b16 %v880
    %v1511 = vunpack.c.l.b16 %v881
    %v1512 = vunpack.c.h.b16 %v881
    %v1513 = vunpack.c.l.b16 %v882
    %v1514 = vunpack.c.h.b16 %v882
    %v1515 = vunpack.c.l.b16 %v883
    %v1516 = vunpack.c.h.b16 %v883
    %v1517 = vunpack.c.l.b16 %v884
    %v1518 = vunpack.c.h.b16 %v884
    %v1519 = vunpack.c.l.b16 %v885
    %v1520 = vunpack.c.h.b16 %v885
    %v1521 = vunpack.c.l.b16 %v886
    %v1522 = vunpack.c.h.b16 %v886
    %v1523 = vunpack.c.l.b16 %v887
    %v1524 = vunpack.c.h.b16 %v887
    %v1525 = vunpack.c.l.b16 %v888
    %v1526 = vunpack.c.h.b16 %v888
    %v1527 = vunpack.c.l.b16 %v889
    %v1528 = vunpack.c.h.b16 %v889
    %v1529 = vunpack.c.l.b16 %v890
    %v1530 = vunpack.c.h.b16 %v890
    %v1531 = vunpack.c.l.b16 %v891
    %v1532 = vunpack.c.h.b16 %v891
    %v1533 = vunpack.c.l.b16 %v892
    %v1534 = vunpack.c.h.b16 %v892
    %v1535 = vunpack.c.l.b16 %v893
    %v1536 = vunpack.c.h.b16 %v893
    %v1537 = vunpack.c.l.b16 %v894
    %v1538 = vunpack.c.h.b16 %v894
    %v1539 = vunpack.c.l.b16 %v895
    %v1540 = vunpack.c.h.b16 %v895
    %v1541 = vunpack.c.l.b16 %v896
    %v1542 = vunpack.c.h.b16 %v896
    %v1543 = vunpack.c.l.b16 %v897
    %v1544 = vunpack.c.h.b16 %v897
    %v1545 = vunpack.c.l.b16 %v898
    %v1546 = vunpack.c.h.b16 %v898
    %v1547 = vunpack.c.l.b16 %v899
    %v1548 = vunpack.c.h.b16 %v899
    %v1549 = vunpack.c.l.b16 %v900
    %v1550 = vunpack.c.h.b16 %v900
    %v1551 = vunpack.c.l.b16 %v901
    %v1552 = vunpack.c.h.b16 %v901
    %v1553 = vunpack.c.l.b16 %v902
    %v1554 = vunpack.c.h.b16 %v902
    %v1555 = vunpack.c.l.b16 %v903
    %v1556 = vunpack.c.h.b16 %v903
    %v1557 = vunpack.c.l.b16 %v904
    %v1558 = vunpack.c.h.b16 %v904
    %v1559 = vunpack.c.l.b16 %v905
    %v1560 = vunpack.c.h.b16 %v905
    %v1561 = vunpack.c.l.b16 %v906
    %v1562 = vunpack.c.h.b16 %v906
    %v1563 = vunpack.c.l.b16 %v907
    %v1564 = vunpack.c.h.b16 %v907
    %v1565 = vunpack.c.l.b16 %v908
    %v1566 = vunpack.c.h.b16 %v908
    %v1567 = vunpack.c.l.b16 %v909
    %v1568 = vunpack.c.h.b16 %v909
    %v1569 = vunpack.c.l.b16 %v910
    %v1570 = vunpack.c.h.b16 %v910
    %v1571 = vunpack.c.l.b16 %v911
    %v1572 = vunpack.c.h.b16 %v911
    %v1573 = vunpack.c.l.b16 %v912
    %v1574 = vunpack.c.h.b16 %v912
    %v1575 = vunpack.c.l.b16 %v913
    %v1576 = vunpack.c.h.b16 %v913
    %v1577 = vunpack.c.l.b16 %v914
    %v1578 = vunpack.c.h.b16 %v914
    %v1579 = vunpack.c.l.b16 %v915
    %v1580 = vunpack.c.h.b16 %v915
    %v1581 = vunpack.c.l.b16 %v916
    %v1582 = vunpack.c.h.b16 %v916
    %v1583 = vunpack.c.l.b16 %v917
    %v1584 = vunpack.c.h.b16 %v917
    %v1585 = vunpack.c.l.b16 %v918
    %v1586 = vunpack.c.h.b16 %v918
    %v1587 = vunpack.c.l.b16 %v919
    %v1588 = vunpack.c.h.b16 %v919
    %v1589 = vunpack.c.l.b16 %v920
    %v1590 = vunpack.c.h.b16 %v920
    %v1591 = vunpack.c.l.b16 %v921
    %v1592 = vunpack.c.h.b16 %v921
    %v1593 = vunpack.c.l.b16 %v922
    %v1594 = vunpack.c.h.b16 %v922
    %v1595 = vunpack.c.l.b16 %v923
    %v1596 = vunpack.c.h.b16 %v923
    %v1597 = vunpack.c.l.b16 %v924
    %v1598 = vunpack.c.h.b16 %v924
    %v1599 = vunpack.c.l.b16 %v925
    %v1600 = vunpack.c.h.b16 %v925
    %v1601 = vunpack.c.l.b16 %v926
    %v1602 = vunpack.c.h.b16 %v926
    %v1603 = vunpack.c.l.b16 %v927
    %v1604 = vunpack.c.h.b16 %v927
    %v1605 = vunpack.c.l.b16 %v928
    %v1606 = vunpack.c.h.b16 %v928
    %v1607 = vunpack.c.l.b16 %v929
    %v1608 = vunpack.c.h.b16 %v929
    %v1609 = vunpack.c.l.b16 %v930
    %v1610 = vunpack.c.h.b16 %v930
    %v1611 = vunpack.c.l.b16 %v931
    %v1612 = vunpack.c.h.b16 %v931
    %v1613 = vunpack.c.l.b16 %v932
    %v1614 = vunpack.c.h.b16 %v932
    %v1615 = vunpack.c.l.b16 %v933
    %v1616 = vunpack.c.h.b16 %v933
    %v1617 = vunpack.c.l.b16 %v934
    %v1618 = vunpack.c.h.b16 %v934
    %v1619 = vunpack.c.l.b16 %v935
    %v1620 = vunpack.c.h.b16 %v935
    %v1621 = vunpack.c.l.b16 %v936
    %v1622 = vunpack.c.h.b16 %v936
    %v1623 = vunpack.c.l.b16 %v937
    %v1624 = vunpack.c.h.b16 %v937
    %v1625 = vunpack.c.l.b16 %v938
    %v1626 = vunpack.c.h.b16 %v938
    %v1627 = vunpack.c.l.b16 %v939
    %v1628 = vunpack.c.h.b16 %v939
    %v1629 = vunpack.c.l.b16 %v940
    %v1630 = vunpack.c.h.b16 %v940
    %v1631 = vunpack.c.l.b16 %v941
    %v1632 = vunpack.c.h.b16 %v941
    %v1633 = vunpack.c.l.b16 %v942
    %v1634 = vunpack.c.h.b16 %v942
    %v1635 = vunpack.c.l.b16 %v943
    %v1636 = vunpack.c.h.b16 %v943
    %v1637 = vunpack.c.l.b16 %v944
    %v1638 = vunpack.c.h.b16 %v944
    %v1639 = vunpack.c.l.b16 %v945
    %v1640 = vunpack.c.h.b16 %v945
    %v1641 = vunpack.c.l.b16 %v946
    %v1642 = vunpack.c.h.b16 %v946
    %v1643 = vunpack.c.l.b16 %v947
    %v1644 = vunpack.c.h.b16 %v947
    %v1645 = vunpack.c.l.b16 %v948
    %v1646 = vunpack.c.h.b16 %v948
    %v1647 = vunpack.c.l.b16 %v949
    %v1648 = vunpack.c.h.b16 %v949
    %v1649 = vunpack.c.l.b16 %v950
    %v1650 = vunpack.c.h.b16 %v950
    %v1651 = vunpack.c.l.b16 %v951
    %v1652 = vunpack.c.h.b16 %v951
    %v1653 = vunpack.c.l.b16 %v952
    %v1654 = vunpack.c.h.b16 %v952
    %v1655 = vunpack.c.l.b16 %v953
    %v1656 = vunpack.c.h.b16 %v953
    %v1657 = vunpack.c.l.b16 %v954
    %v1658 = vunpack.c.h.b16 %v954
    %v1659 = vunpack.c.l.b16 %v955
    %v1660 = vunpack.c.h.b16 %v955
    %v1661 = vunpack.c.l.b16 %v956
    %v1662 = vunpack.c.h.b16 %v956
    %v1663 = vunpack.c.l.b16 %v957
    %v1664 = vunpack.c.h.b16 %v957
    %v1665 = vunpack.c.l.b16 %v958
    %v1666 = vunpack.c.h.b16 %v958
    %v1667 = vunpack.c.l.b16 %v959
    %v1668 = vunpack.c.h.b16 %v959
    %v1669 = vunpack.c.l.b16 %v960
    %v1670 = vunpack.c.h.b16 %v960
    %v1671 = vunpack.c.l.b16 %v961
    %v1672 = vunpack.c.h.b16 %v961
    %v1673 = vunpack.c.l.b16 %v962
    %v1674 = vunpack.c.h.b16 %v962
    %v1675 = vunpack.c.l.b16 %v963
    %v1676 = vunpack.c.h.b16 %v963
    %v1677 = vunpack.c.l.b16 %v964
    %v1678 = vunpack.c.h.b16 %v964
    %v1679 = vunpack.c.l.b16 %v965
    %v1680 = vunpack.c.h.b16 %v965
    %v1681 = vunpack.c.l.b16 %v966
    %v1682 = vunpack.c.h.b16 %v966
    %v1683 = vunpack.c.l.b16 %v967
    %v1684 = vunpack.c.h.b16 %v967
    %v1685 = vunpack.c.l.b16 %v968
    %v1686 = vunpack.c.h.b16 %v968
    %v1687 = vunpack.c.l.b16 %v969
    %v1688 = vunpack.c.h.b16 %v969
    %v1689 = vunpack.c.l.b16 %v970
    %v1690 = vunpack.c.h.b16 %v970
    %v1691 = vunpack.c.l.b16 %v971
    %v1692 = vunpack.c.h.b16 %v971
    %v1693 = vunpack.c.l.b16 %v972
    %v1694 = vunpack.c.h.b16 %v972
    %v1695 = vunpack.c.l.b16 %v973
    %v1696 = vunpack.c.h.b16 %v973
    %v1697 = vunpack.c.l.b16 %v974
    %v1698 = vunpack.c.h.b16 %v974
    %v1699 = vunpack.c.l.b16 %v975
    %v1700 = vunpack.c.h.b16 %v975
    %v1701 = vunpack.c.l.b16 %v976
    %v1702 = vunpack.c.h.b16 %v976
    %v1703 = vunpack.c.l.b16 %v977
    %v1704 = vunpack.c.h.b16 %v977
    %v1705 = vunpack.c.l.b16 %v978
    %v1706 = vunpack.c.h.b16 %v978
    %v1707 = vunpack.c.l.b16 %v979
    %v1708 = vunpack.c.h.b16 %v979
    %v1709 = vunpack.c.l.b16 %v980
    %v1710 = vunpack.c.h.b16 %v980
    %v1711 = vunpack.c.l.b16 %v981
    %v1712 = vunpack.c.h.b16 %v981
    %v1713 = vunpack.c.l.b16 %v982
    %v1714 = vunpack.c.h.b16 %v982
    %v1715 = vunpack.c.l.b16 %v983
    %v1716 = vunpack.c.h.b16 %v983
    %v1717 = vunpack.c.l.b16 %v984
    %v1718 = vunpack.c.h.b16 %v984
    %v1719 = vunpack.c.l.b16 %v985
    %v1720 = vunpack.c.h.b16 %v985
    %v1721 = vunpack.c.l.b16 %v986
    %v1722 = vunpack.c.h.b16 %v986
    %v1723 = vunpack.c.l.b16 %v987
    %v1724 = vunpack.c.h.b16 %v987
    %v1725 = vunpack.c.l.b16 %v988
    %v1726 = vunpack.c.h.b16 %v988
    %v1727 = vunpack.c.l.b16 %v989
    %v1728 = vunpack.c.h.b16 %v989
    %v1729 = vunpack.c.l.b16 %v990
    %v1730 = vunpack.c.h.b16 %v990
    %v1731 = vunpack.c.l.b16 %v991
    %v1732 = vunpack.c.h.b16 %v991
    %v1733 = vunpack.c.l.b16 %v992
    %v1734 = vunpack.c.h.b16 %v992
    %v1735 = vunpack.c.l.b16 %v993
    %v1736 = vunpack.c.h.b16 %v993
    %v1737 = vunpack.c.l.b16 %v994
    %v1738 = vunpack.c.h.b16 %v994
    %v1739 = vunpack.c.l.b16 %v995
    %v1740 = vunpack.c.h.b16 %v995
    %v1741 = vunpack.c.l.b16 %v996
    %v1742 = vunpack.c.h.b16 %v996
    %v1743 = vunpack.c.l.b16 %v997
    %v1744 = vunpack.c.h.b16 %v997
    %v1745 = vunpack.c.l.b16 %v998
    %v1746 = vunpack.c.h.b16 %v998
    %v1747 = vunpack.c.l.b16 %v999
    %v1748 = vunpack.c.h.b16 %v999
    %v1749 = vunpack.c.l.b16 %v1000
    %v1750 = vunpack.c.h.b16 %v1000
    %v1751 = vunpack.c.l.b16 %v1001
    %v1752 = vunpack.c.h.b16 %v1001
    %v1753 = vunpack.c.l.b16 %v1002
    %v1754 = vunpack.c.h.b16 %v1002
    %v1755 = vunpack.c.l.b16 %v1003
    %v1756 = vunpack.c.h.b16 %v1003
    %v1757 = vunpack.c.l.b16 %v1004
    %v1758 = vunpack.c.h.b16 %v1004
    %v1759 = vunpack.c.l.b16 %v1005
    %v1760 = vunpack.c.h.b16 %v1005
    %v1761 = vunpack.c.l.b16 %v1006
    %v1762 = vunpack.c.h.b16 %v1006
    %v1763 = vunpack.c.l.b16 %v1007
    %v1764 = vunpack.c.h.b16 %v1007
    %v1765 = vunpack.c.l.b16 %v1008
    %v1766 = vunpack.c.h.b16 %v1008
    %v1767 = vunpack.c.l.b16 %v1009
    %v1768 = vunpack.c.h.b16 %v1009
    %v1769 = vunpack.c.l.b16 %v1010
    %v1770 = vunpack.c.h.b16 %v1010
    %v1771 = vunpack.c.l.b16 %v1011
    %v1772 = vunpack.c.h.b16 %v1011
    %v1773 = vunpack.c.l.b16 %v1012
    %v1774 = vunpack.c.h.b16 %v1012
    %v1775 = vunpack.c.l.b16 %v1013
    %v1776 = vunpack.c.h.b16 %v1013
    %v1777 = vunpack.c.l.b16 %v1014
    %v1778 = vunpack.c.h.b16 %v1014
    %v1779 = vunpack.c.l.b16 %v1015
    %v1780 = vunpack.c.h.b16 %v1015
    %v1781 = vunpack.c.l.b16 %v1016
    %v1782 = vunpack.c.h.b16 %v1016
    %v1783 = vunpack.c.l.b16 %v1017
    %v1784 = vunpack.c.h.b16 %v1017
    %v1785 = vunpack.c.l.b16 %v1018
    %v1786 = vunpack.c.h.b16 %v1018
    %v1787 = vpack.c.b16 %v1279, %v1275
    %v1788 = vpack.c.b16 %v1280, %v1276
    %v1789 = vpack.c.b16 %v1281, %v1277
    %v1790 = vpack.c.b16 %v1282, %v1278
    %v1791 = vpack.c.b16 %v1287, %v1283
    %v1792 = vpack.c.b16 %v1288, %v1284
    %v1793 = vpack.c.b16 %v1289, %v1285
    %v1794 = vpack.c.b16 %v1290, %v1286
    %v1795 = vpack.c.b16 %v1295, %v1291
    %v1796 = vpack.c.b16 %v1296, %v1292
    %v1797 = vpack.c.b16 %v1297, %v1293
    %v1798 = vpack.c.b16 %v1298, %v1294
    %v1799 = vpack.c.b16 %v1303, %v1299
    %v1800 = vpack.c.b16 %v1304, %v1300
    %v1801 = vpack.c.b16 %v1305, %v1301
    %v1802 = vpack.c.b16 %v1306, %v1302
    %v1803 = vpack.c.b16 %v1311, %v1307
    %v1804 = vpack.c.b16 %v1312, %v1308
    %v1805 = vpack.c.b16 %v1313, %v1309
    %v1806 = vpack.c.b16 %v1314, %v1310
    %v1807 = vpack.c.b16 %v1319, %v1315
    %v1808 = vpack.c.b16 %v1320, %v1316
    %v1809 = vpack.c.b16 %v1321, %v1317
    %v1810 = vpack.c.b16 %v1322, %v1318
    %v1811 = vpack.c.b16 %v1327, %v1323
    %v1812 = vpack.c.b16 %v1328, %v1324
    %v1813 = vpack.c.b16 %v1329, %v1325
    %v1814 = vpack.c.b16 %v1330, %v1326
    %v1815 = vpack.c.b16 %v1335, %v1331
    %v1816 = vpack.c.b16 %v1336, %v1332
    %v1817 = vpack.c.b16 %v1337, %v1333
    %v1818 = vpack.c.b16 %v1338, %v1334
    %v1819 = vpack.c.b16 %v1343, %v1339
    %v1820 = vpack.c.b16 %v1344, %v1340
    %v1821 = vpack.c.b16 %v1345, %v1341
    %v1822 = vpack.c.b16 %v1346, %v1342
    %v1823 = vpack.c.b16 %v1351, %v1347
    %v1824 = vpack.c.b16 %v1352, %v1348
    %v1825 = vpack.c.b16 %v1353, %v1349
    %v1826 = vpack.c.b16 %v1354, %v1350
    %v1827 = vpack.c.b16 %v1359, %v1355
    %v1828 = vpack.c.b16 %v1360, %v1356
    %v1829 = vpack.c.b16 %v1361, %v1357
    %v1830 = vpack.c.b16 %v1362, %v1358
    %v1831 = vpack.c.b16 %v1367, %v1363
    %v1832 = vpack.c.b16 %v1368, %v1364
    %v1833 = vpack.c.b16 %v1369, %v1365
    %v1834 = vpack.c.b16 %v1370, %v1366
    %v1835 = vpack.c.b16 %v1375, %v1371
    %v1836 = vpack.c.b16 %v1376, %v1372
    %v1837 = vpack.c.b16 %v1377, %v1373
    %v1838 = vpack.c.b16 %v1378, %v1374
    %v1839 = vpack.c.b16 %v1383, %v1379
    %v1840 = vpack.c.b16 %v1384, %v1380
    %v1841 = vpack.c.b16 %v1385, %v1381
    %v1842 = vpack.c.b16 %v1386, %v1382
    %v1843 = vpack.c.b16 %v1391, %v1387
    %v1844 = vpack.c.b16 %v1392, %v1388
    %v1845 = vpack.c.b16 %v1393, %v1389
    %v1846 = vpack.c.b16 %v1394, %v1390
    %v1847 = vpack.c.b16 %v1399, %v1395
    %v1848 = vpack.c.b16 %v1400, %v1396
    %v1849 = vpack.c.b16 %v1401, %v1397
    %v1850 = vpack.c.b16 %v1402, %v1398
    %v1851 = vpack.c.b16 %v1407, %v1403
    %v1852 = vpack.c.b16 %v1408, %v1404
    %v1853 = vpack.c.b16 %v1409, %v1405
    %v1854 = vpack.c.b16 %v1410, %v1406
    %v1855 = vpack.c.b16 %v1415, %v1411
    %v1856 = vpack.c.b16 %v1416, %v1412
    %v1857 = vpack.c.b16 %v1417, %v1413
    %v1858 = vpack.c.b16 %v1418, %v1414
    %v1859 = vpack.c.b16 %v1423, %v1419
    %v1860 = vpack.c.b16 %v1424, %v1420
    %v1861 = vpack.c.b16 %v1425, %v1421
    %v1862 = vpack.c.b16 %v1426, %v1422
    %v1863 = vpack.c.b16 %v1431, %v1427
    %v1864 = vpack.c.b16 %v1432, %v1428
    %v1865 = vpack.c.b16 %v1433, %v1429
    %v1866 = vpack.c.b16 %v1434, %v1430
    %v1867 = vpack.c.b16 %v1439, %v1435
    %v1868 = vpack.c.b16 %v1440, %v1436
    %v1869 = vpack.c.b16 %v1441, %v1437
    %v1870 = vpack.c.b16 %v1442, %v1438
    %v1871 = vpack.c.b16 %v1447, %v1443
    %v1872 = vpack.c.b16 %v1448, %v1444
    %v1873 = vpack.c.b16 %v1449, %v1445
    %v1874 = vpack.c.b16 %v1450, %v1446
    %v1875 = vpack.c.b16 %v1455, %v1451
    %v1876 = vpack.c.b16 %v1456, %v1452
    %v1877 = vpack.c.b16 %v1457, %v1453
    %v1878 = vpack.c.b16 %v1458, %v1454
    %v1879 = vpack.c.b16 %v1463, %v1459
    %v1880 = vpack.c.b16 %v1464, %v1460
    %v1881 = vpack.c.b16 %v1465, %v1461
    %v1882 = vpack.c.b16 %v1466, %v1462
    %v1883 = vpack.c.b16 %v1471, %v1467
    %v1884 = vpack.c.b16 %v1472, %v1468
    %v1885 = vpack.c.b16 %v1473, %v1469
    %v1886 = vpack.c.b16 %v1474, %v1470
    %v1887 = vpack.c.b16 %v1479, %v1475
    %v1888 = vpack.c.b16 %v1480, %v1476
    %v1889 = vpack.c.b16 %v1481, %v1477
    %v1890 = vpack.c.b16 %v1482, %v1478
    %v1891 = vpack.c.b16 %v1487, %v1483
    %v1892 = vpack.c.b16 %v1488, %v1484
    %v1893 = vpack.c.b16 %v1489, %v1485
    %v1894 = vpack.c.b16 %v1490, %v1486
    %v1895 = vpack.c.b16 %v1495, %v1491
    %v1896 = vpack.c.b16 %v1496, %v1492
    %v1897 = vpack.c.b16 %v1497, %v1493
    %v1898 = vpack.c.b16 %v1498, %v1494
    %v1899 = vpack.c.b16 %v1503, %v1499
    %v1900 = vpack.c.b16 %v1504, %v1500
    %v1901 = vpack.c.b16 %v1505, %v1501
    %v1902 = vpack.c.b16 %v1506, %v1502
    %v1903 = vpack.c.b16 %v1511, %v1507
    %v1904 = vpack.c.b16 %v1512, %v1508
    %v1905 = vpack.c.b16 %v1513, %v1509
    %v1906 = vpack.c.b16 %v1514, %v1510
    %v1907 = vpack.c.b16 %v1519, %v1515
    %v1908 = vpack.c.b16 %v1520, %v1516
    %v1909 = vpack.c.b16 %v1521, %v1517
    %v1910 = vpack.c.b16 %v1522, %v1518
    %v1911 = vpack.c.b16 %v1527, %v1523
    %v1912 = vpack.c.b16 %v1528, %v1524
    %v1913 = vpack.c.b16 %v1529, %v1525
    %v1914 = vpack.c.b16 %v1530, %v1526
    %v1915 = vpack.c.b16 %v1535, %v1531
    %v1916 = vpack.c.b16 %v1536, %v1532
    %v1917 = vpack.c.b16 %v1537, %v1533
    %v1918 = vpack.c.b16 %v1538, %v1534
    %v1919 = vpack.c.b16 %v1543, %v1539
    %v1920 = vpack.c.b16 %v1544, %v1540
    %v1921 = vpack.c.b16 %v1545, %v1541
    %v1922 = vpack.c.b16 %v1546, %v1542
    %v1923 = vpack.c.b16 %v1551, %v1547
    %v1924 = vpack.c.b16 %v1552, %v1548
    %v1925 = vpack.c.b16 %v1553, %v1549
    %v1926 = vpack.c.b16 %v1554, %v1550
    %v1927 = vpack.c.b16 %v1559, %v1555
    %v1928 = vpack.c.b16 %v1560, %v1556
    %v1929 = vpack.c.b16 %v1561, %v1557
    %v1930 = vpack.c.b16 %v1562, %v1558
    %v1931 = vpack.c.b16 %v1567, %v1563
    %v1932 = vpack.c.b16 %v1568, %v1564
    %v1933 = vpack.c.b16 %v1569, %v1565
    %v1934 = vpack.c.b16 %v1570, %v1566
    %v1935 = vpack.c.b16 %v1575, %v1571
    %v1936 = vpack.c.b16 %v1576, %v1572
    %v1937 = vpack.c.b16 %v1577, %v1573
    %v1938 = vpack.c.b16 %v1578, %v1574
    %v1939 = vpack.c.b16 %v1583, %v1579
    %v1940 = vpack.c.b16 %v1584, %v1580
    %v1941 = vpack.c.b16 %v1585, %v1581
    %v1942 = vpack.c.b16 %v1586, %v1582
    %v1943 = vpack.c.b16 %v1591, %v1587
    %v1944 = vpack.c.b16 %v1592, %v1588
    %v1945 = vpack.c.b16 %v1593, %v1589
    %v1946 = vpack.c.b16 %v1594, %v1590
    %v1947 = vpack.c.b16 %v1599, %v1595
    %v1948 = vpack.c.b16 %v1600, %v1596
    %v1949 = vpack.c.b16 %v1601, %v1597
    %v1950 = vpack.c.b16 %v1602, %v1598
    %v1951 = vpack.c.b16 %v1607, %v1603
    %v1952 = vpack.c.b16 %v1608, %v1604
    %v1953 = vpack.c.b16 %v1609, %v1605
    %v1954 = vpack.c.b16 %v1610, %v1606
    %v1955 = vpack.c.b16 %v1615, %v1611
    %v1956 = vpack.c.b16 %v1616, %v1612
    %v1957 = vpack.c.b16 %v1617, %v1613
    %v1958 = vpack.c.b16 %v1618, %v1614
    %v1959 = vpack.c.b16 %v1623, %v1619
    %v1960 = vpack.c.b16 %v1624, %v1620
    %v1961 = vpack.c.b16 %v1625, %v1621
    %v1962 = vpack.c.b16 %v1626, %v1622
    %v1963 = vpack.c.b16 %v1631, %v1627
    %v1964 = vpack.c.b16 %v1632, %v1628
    %v1965 = vpack.c.b16 %v1633, %v1629
    %v1966 = vpack.c.b16 %v1634, %v1630
    %v1967 = vpack.c.b16 %v1639, %v1635
    %v1968 = vpack.c.b16 %v1640, %v1636
    %v1969 = vpack.c.b16 %v1641, %v1637
    %v1970 = vpack.c.b16 %v1642, %v1638
    %v1971 = vpack.c.b16 %v1647, %v1643
    %v1972 = vpack.c.b16 %v1648, %v1644
    %v1973 = vpack.c.b16 %v1649, %v1645
    %v1974 = vpack.c.b16 %v1650, %v1646
    %v1975 = vpack.c.b16 %v1655, %v1651
    %v1976 = vpack.c.b16 %v1656, %v1652
    %v1977 = vpack.c.b16 %v1657, %v1653
    %v1978 = vpack.c.b16 %v1658, %v1654
    %v1979 = vpack.c.b16 %v1663, %v1659
    %v1980 = vpack.c.b16 %v1664, %v1660
    %v1981 = vpack.c.b16 %v1665, %v1661
    %v1982 = vpack.c.b16 %v1666, %v1662
    %v1983 = vpack.c.b16 %v1671, %v1667
    %v1984 = vpack.c.b16 %v1672, %v1668
    %v1985 = vpack.c.b16 %v1673, %v1669
    %v1986 = vpack.c.b16 %v1674, %v1670
    %v1987 = vpack.c.b16 %v1679, %v1675
    %v1988 = vpack.c.b16 %v1680, %v1676
    %v1989 = vpack.c.b16 %v1681, %v1677
    %v1990 = vpack.c.b16 %v1682, %v1678
    %v1991 = vpack.c.b16 %v1687, %v1683
    %v1992 = vpack.c.b16 %v1688, %v1684
    %v1993 = vpack.c.b16 %v1689, %v1685
    %v1994 = vpack.c.b16 %v1690, %v1686
    %v1995 = vpack.c.b16 %v1695, %v1691
    %v1996 = vpack.c.b16 %v1696, %v1692
    %v1997 = vpack.c.b16 %v1697, %v1693
    %v1998 = vpack.c.b16 %v1698, %v1694
    %v1999 = vpack.c.b16 %v1703, %v1699
    %v2000 = vpack.c.b16 %v1704, %v1700
    %v2001 = vpack.c.b16 %v1705, %v1701
    %v2002 = vpack.c.b16 %v1706, %v1702
    %v2003 = vpack.c.b16 %v1711, %v1707
    %v2004 = vpack.c.b16 %v1712, %v1708
    %v2005 = vpack.c.b16 %v1713, %v1709
    %v2006 = vpack.c.b16 %v1714, %v1710
    %v2007 = vpack.c.b16 %v1719, %v1715
    %v2008 = vpack.c.b16 %v1720, %v1716
    %v2009 = vpack.c.b16 %v1721, %v1717
    %v2010 = vpack.c.b16 %v1722, %v1718
    %v2011 = vpack.c.b16 %v1727, %v1723
    %v2012 = vpack.c.b16 %v1728, %v1724
    %v2013 = vpack.c.b16 %v1729, %v1725
    %v2014 = vpack.c.b16 %v1730, %v1726
    %v2015 = vpack.c.b16 %v1735, %v1731
    %v2016 = vpack.c.b16 %v1736, %v1732
    %v2017 = vpack.c.b16 %v1737, %v1733
    %v2018 = vpack.c.b16 %v1738, %v1734
    %v2019 = vpack.c.b16 %v1743, %v1739
    %v2020 = vpack.c.b16 %v1744, %v1740
    %v2021 = vpack.c.b16 %v1745, %v1741
    %v2022 = vpack.c.b16 %v1746, %v1742
    %v2023 = vpack.c.b16 %v1751, %v1747
    %v2024 = vpack.c.b16 %v1752, %v1748
    %v2025 = vpack.c.b16 %v1753, %v1749
    %v2026 = vpack.c.b16 %v1754, %v1750
    %v2027 = vpack.c.b16 %v1759, %v1755
    %v2028 = vpack.c.b16 %v1760, %v1756
    %v2029 = vpack.c.b16 %v1761, %v1757
    %v2030 = vpack.c.b16 %v1762, %v1758
    %v2031 = vpack.c.b16 %v1767, %v1763
    %v2032 = vpack.c.b16 %v1768, %v1764
    %v2033 = vpack.c.b16 %v1769, %v1765
    %v2034 = vpack.c.b16 %v1770, %v1766
    %v2035 = vpack.c.b16 %v1775, %v1771
    %v2036 = vpack.c.b16 %v1776, %v1772
    %v2037 = vpack.c.b16 %v1777, %v1773
    %v2038 = vpack.c.b16 %v1778, %v1774
    %v2039 = vpack.c.b16 %v1783, %v1779
    %v2040 = vpack.c.b16 %v1784, %v1780
    %v2041 = vpack.c.b16 %v1785, %v1781
    %v2042 = vpack.c.b16 %v1786, %v1782
    %2299 = vmatprep.subr.bf16.mxu0 %v1788
    %2300 = vmatpush1.bf16.msra.mxu0 %v1787
    %2301 = vmatprep.subr.bf16.mxu0 %v1792
    %2302 = vmatpush1.bf16.msra.mxu0 %v1791
    %2303 = vmatprep.subr.bf16.mxu0 %v1796
    %2304 = vmatpush1.bf16.msra.mxu0 %v1795
    %2305 = vmatprep.subr.bf16.mxu0 %v1800
    %2306 = vmatpush1.bf16.msra.mxu0 %v1799
    %2307 = vmatprep.subr.bf16.mxu0 %v1804
    %2308 = vmatpush1.bf16.msra.mxu0 %v1803
    %2309 = vmatprep.subr.bf16.mxu0 %v1808
    %2310 = vmatpush1.bf16.msra.mxu0 %v1807
    %2311 = vmatprep.subr.bf16.mxu0 %v1812
    %2312 = vmatpush1.bf16.msra.mxu0 %v1811
    %2313 = vmatprep.subr.bf16.mxu0 %v1816
    %2314 = vmatpush1.bf16.msra.mxu0 %v1815
    %2315 = vmatprep.subr.bf16.mxu0 %v1820
    %2316 = vmatpush1.bf16.msra.mxu0 %v1819
    %2317 = vmatprep.subr.bf16.mxu0 %v1824
    %2318 = vmatpush1.bf16.msra.mxu0 %v1823
    %2319 = vmatprep.subr.bf16.mxu0 %v1828
    %2320 = vmatpush1.bf16.msra.mxu0 %v1827
    %2321 = vmatprep.subr.bf16.mxu0 %v1832
    %2322 = vmatpush1.bf16.msra.mxu0 %v1831
    %2323 = vmatprep.subr.bf16.mxu0 %v1836
    %2324 = vmatpush1.bf16.msra.mxu0 %v1835
    %2325 = vmatprep.subr.bf16.mxu0 %v1840
    %2326 = vmatpush1.bf16.msra.mxu0 %v1839
    %2327 = vmatprep.subr.bf16.mxu0 %v1844
    %2328 = vmatpush1.bf16.msra.mxu0 %v1843
    %2329 = vmatprep.subr.bf16.mxu0 %v1848
    %2330 = vmatpush1.bf16.msra.mxu0 %v1847
    %2331 = vmatprep.mubr.bf16.mxu0 %v756
    %2332 = vmatmul.mubr.bf16.gmra.mrb[0].mxu0 %v755
    %v2333 = vpop.f32.mrb[0].mxu0
    %v2334 = vadd.f32 0.0, %v2333
    %v2335 = vpop.f32.mrb[0].mxu0
    %v2336 = vadd.f32 0.0, %v2335
    %v2337 = vpop.f32.mrb[0].mxu0
    %v2338 = vadd.f32 0.0, %v2337
    %v2339 = vpop.f32.mrb[0].mxu0
    %v2340 = vadd.f32 0.0, %v2339
    %2341 = vdwg.mxu0
    %2342 = vmatprep.subr.bf16.mxu0 %v1852
    %2343 = vmatpush1.bf16.msra.mxu0 %v1851
    %2344 = vmatprep.subr.bf16.mxu0 %v1856
    %2345 = vmatpush1.bf16.msra.mxu0 %v1855
    %2346 = vmatprep.subr.bf16.mxu0 %v1860
    %2347 = vmatpush1.bf16.msra.mxu0 %v1859
    %2348 = vmatprep.subr.bf16.mxu0 %v1864
    %2349 = vmatpush1.bf16.msra.mxu0 %v1863
    %2350 = vmatprep.subr.bf16.mxu0 %v1868
    %2351 = vmatpush1.bf16.msra.mxu0 %v1867
    %2352 = vmatprep.subr.bf16.mxu0 %v1872
    %2353 = vmatpush1.bf16.msra.mxu0 %v1871
    %2354 = vmatprep.subr.bf16.mxu0 %v1876
    %2355 = vmatpush1.bf16.msra.mxu0 %v1875
    %2356 = vmatprep.subr.bf16.mxu0 %v1880
    %2357 = vmatpush1.bf16.msra.mxu0 %v1879
    %2358 = vmatprep.subr.bf16.mxu0 %v1884
    %2359 = vmatpush1.bf16.msra.mxu0 %v1883
    %2360 = vmatprep.subr.bf16.mxu0 %v1888
    %2361 = vmatpush1.bf16.msra.mxu0 %v1887
    %2362 = vmatprep.subr.bf16.mxu0 %v1892
    %2363 = vmatpush1.bf16.msra.mxu0 %v1891
    %2364 = vmatprep.subr.bf16.mxu0 %v1896
    %2365 = vmatpush1.bf16.msra.mxu0 %v1895
    %2366 = vmatprep.subr.bf16.mxu0 %v1900
    %2367 = vmatpush1.bf16.msra.mxu0 %v1899
    %2368 = vmatprep.subr.bf16.mxu0 %v1904
    %2369 = vmatpush1.bf16.msra.mxu0 %v1903
    %2370 = vmatprep.subr.bf16.mxu0 %v1908
    %2371 = vmatpush1.bf16.msra.mxu0 %v1907
    %2372 = vmatprep.subr.bf16.mxu0 %v1912
    %2373 = vmatpush1.bf16.msra.mxu0 %v1911
    %2374 = vmatprep.mubr.bf16.mxu0 %v758
    %2375 = vmatmul.mubr.bf16.gmra.mrb[0].mxu0 %v757
    %v2376 = vpop.f32.mrb[0].mxu0
    %v2377 = vadd.f32 %v2334, %v2376
    %v2378 = vpop.f32.mrb[0].mxu0
    %v2379 = vadd.f32 %v2336, %v2378
    %v2380 = vpop.f32.mrb[0].mxu0
    %v2381 = vadd.f32 %v2338, %v2380
    %v2382 = vpop.f32.mrb[0].mxu0
    %v2383 = vadd.f32 %v2340, %v2382
    %2384 = vdwg.mxu0
    %2385 = vmatprep.subr.bf16.mxu0 %v1916
    %2386 = vmatpush1.bf16.msra.mxu0 %v1915
    %2387 = vmatprep.subr.bf16.mxu0 %v1920
    %2388 = vmatpush1.bf16.msra.mxu0 %v1919
    %2389 = vmatprep.subr.bf16.mxu0 %v1924
    %2390 = vmatpush1.bf16.msra.mxu0 %v1923
    %2391 = vmatprep.subr.bf16.mxu0 %v1928
    %2392 = vmatpush1.bf16.msra.mxu0 %v1927
    %2393 = vmatprep.subr.bf16.mxu0 %v1932
    %2394 = vmatpush1.bf16.msra.mxu0 %v1931
    %2395 = vmatprep.subr.bf16.mxu0 %v1936
    %2396 = vmatpush1.bf16.msra.mxu0 %v1935
    %2397 = vmatprep.subr.bf16.mxu0 %v1940
    %2398 = vmatpush1.bf16.msra.mxu0 %v1939
    %2399 = vmatprep.subr.bf16.mxu0 %v1944
    %2400 = vmatpush1.bf16.msra.mxu0 %v1943
    %2401 = vmatprep.subr.bf16.mxu0 %v1948
    %2402 = vmatpush1.bf16.msra.mxu0 %v1947
    %2403 = vmatprep.subr.bf16.mxu0 %v1952
    %2404 = vmatpush1.bf16.msra.mxu0 %v1951
    %2405 = vmatprep.subr.bf16.mxu0 %v1956
    %2406 = vmatpush1.bf16.msra.mxu0 %v1955
    %2407 = vmatprep.subr.bf16.mxu0 %v1960
    %2408 = vmatpush1.bf16.msra.mxu0 %v1959
    %2409 = vmatprep.subr.bf16.mxu0 %v1964
    %2410 = vmatpush1.bf16.msra.mxu0 %v1963
    %2411 = vmatprep.subr.bf16.mxu0 %v1968
    %2412 = vmatpush1.bf16.msra.mxu0 %v1967
    %2413 = vmatprep.subr.bf16.mxu0 %v1972
    %2414 = vmatpush1.bf16.msra.mxu0 %v1971
    %2415 = vmatprep.subr.bf16.mxu0 %v1976
    %2416 = vmatpush1.bf16.msra.mxu0 %v1975
    %2417 = vmatprep.mubr.bf16.mxu0 %v760
    %2418 = vmatmul.mubr.bf16.gmra.mrb[0].mxu0 %v759
    %v2419 = vpop.f32.mrb[0].mxu0
    %v2420 = vadd.f32 %v2377, %v2419
    %v2421 = vpop.f32.mrb[0].mxu0
    %v2422 = vadd.f32 %v2379, %v2421
    %v2423 = vpop.f32.mrb[0].mxu0
    %v2424 = vadd.f32 %v2381, %v2423
    %v2425 = vpop.f32.mrb[0].mxu0
    %v2426 = vadd.f32 %v2383, %v2425
    %2427 = vdwg.mxu0
    %2428 = vmatprep.subr.bf16.mxu0 %v1980
    %2429 = vmatpush1.bf16.msra.mxu0 %v1979
    %2430 = vmatprep.subr.bf16.mxu0 %v1984
    %2431 = vmatpush1.bf16.msra.mxu0 %v1983
    %2432 = vmatprep.subr.bf16.mxu0 %v1988
    %2433 = vmatpush1.bf16.msra.mxu0 %v1987
    %2434 = vmatprep.subr.bf16.mxu0 %v1992
    %2435 = vmatpush1.bf16.msra.mxu0 %v1991
    %2436 = vmatprep.subr.bf16.mxu0 %v1996
    %2437 = vmatpush1.bf16.msra.mxu0 %v1995
    %2438 = vmatprep.subr.bf16.mxu0 %v2000
    %2439 = vmatpush1.bf16.msra.mxu0 %v1999
    %2440 = vmatprep.subr.bf16.mxu0 %v2004
    %2441 = vmatpush1.bf16.msra.mxu0 %v2003
    %2442 = vmatprep.subr.bf16.mxu0 %v2008
    %2443 = vmatpush1.bf16.msra.mxu0 %v2007
    %2444 = vmatprep.subr.bf16.mxu0 %v2012
    %2445 = vmatpush1.bf16.msra.mxu0 %v2011
    %2446 = vmatprep.subr.bf16.mxu0 %v2016
    %2447 = vmatpush1.bf16.msra.mxu0 %v2015
    %2448 = vmatprep.subr.bf16.mxu0 %v2020
    %2449 = vmatpush1.bf16.msra.mxu0 %v2019
    %2450 = vmatprep.subr.bf16.mxu0 %v2024
    %2451 = vmatpush1.bf16.msra.mxu0 %v2023
    %2452 = vmatprep.subr.bf16.mxu0 %v2028
    %2453 = vmatpush1.bf16.msra.mxu0 %v2027
    %2454 = vmatprep.subr.bf16.mxu0 %v2032
    %2455 = vmatpush1.bf16.msra.mxu0 %v2031
    %2456 = vmatprep.subr.bf16.mxu0 %v2036
    %2457 = vmatpush1.bf16.msra.mxu0 %v2035
    %2458 = vmatprep.subr.bf16.mxu0 %v2040
    %2459 = vmatpush1.bf16.msra.mxu0 %v2039
    %2460 = vmatprep.mubr.bf16.mxu0 %v762
    %2461 = vmatmul.mubr.bf16.gmra.mrb[0].mxu0 %v761
    %v2462 = vpop.f32.mrb[0].mxu0
    %v2463 = vadd.f32 %v2420, %v2462
    %v2464 = vpop.f32.mrb[0].mxu0
    %v2465 = vadd.f32 %v2422, %v2464
    %v2466 = vpop.f32.mrb[0].mxu0
    %v2467 = vadd.f32 %v2424, %v2466
    %v2468 = vpop.f32.mrb[0].mxu0
    %v2469 = vadd.f32 %v2426, %v2468
    %2470 = vdwg.mxu0
    %2471 = vmatprep.subr.bf16.mxu0 %v1790
    %2472 = vmatpush1.bf16.msra.mxu0 %v1789
    %2473 = vmatprep.subr.bf16.mxu0 %v1794
    %2474 = vmatpush1.bf16.msra.mxu0 %v1793
    %2475 = vmatprep.subr.bf16.mxu0 %v1798
    %2476 = vmatpush1.bf16.msra.mxu0 %v1797
    %2477 = vmatprep.subr.bf16.mxu0 %v1802
    %2478 = vmatpush1.bf16.msra.mxu0 %v1801
    %2479 = vmatprep.subr.bf16.mxu0 %v1806
    %2480 = vmatpush1.bf16.msra.mxu0 %v1805
    %2481 = vmatprep.subr.bf16.mxu0 %v1810
    %2482 = vmatpush1.bf16.msra.mxu0 %v1809
    %2483 = vmatprep.subr.bf16.mxu0 %v1814
    %2484 = vmatpush1.bf16.msra.mxu0 %v1813
    %2485 = vmatprep.subr.bf16.mxu0 %v1818
    %2486 = vmatpush1.bf16.msra.mxu0 %v1817
    %2487 = vmatprep.subr.bf16.mxu0 %v1822
    %2488 = vmatpush1.bf16.msra.mxu0 %v1821
    %2489 = vmatprep.subr.bf16.mxu0 %v1826
    %2490 = vmatpush1.bf16.msra.mxu0 %v1825
    %2491 = vmatprep.subr.bf16.mxu0 %v1830
    %2492 = vmatpush1.bf16.msra.mxu0 %v1829
    %2493 = vmatprep.subr.bf16.mxu0 %v1834
    %2494 = vmatpush1.bf16.msra.mxu0 %v1833
    %2495 = vmatprep.subr.bf16.mxu0 %v1838
    %2496 = vmatpush1.bf16.msra.mxu0 %v1837
    %2497 = vmatprep.subr.bf16.mxu0 %v1842
    %2498 = vmatpush1.bf16.msra.mxu0 %v1841
    %2499 = vmatprep.subr.bf16.mxu0 %v1846
    %2500 = vmatpush1.bf16.msra.mxu0 %v1845
    %2501 = vmatprep.subr.bf16.mxu0 %v1850
    %2502 = vmatpush1.bf16.msra.mxu0 %v1849
    %2503 = vmatprep.mubr.bf16.mxu0 %v756
    %2504 = vmatmul.mubr.bf16.gmra.mrb[0].mxu0 %v755
    %v2505 = vpop.f32.mrb[0].mxu0
    %v2506 = vadd.f32 0.0, %v2505
    %v2507 = vpop.f32.mrb[0].mxu0
    %v2508 = vadd.f32 0.0, %v2507
    %v2509 = vpop.f32.mrb[0].mxu0
    %v2510 = vadd.f32 0.0, %v2509
    %v2511 = vpop.f32.mrb[0].mxu0
    %v2512 = vadd.f32 0.0, %v2511
    %2513 = vdwg.mxu0
    %2514 = vmatprep.subr.bf16.mxu0 %v1854
    %2515 = vmatpush1.bf16.msra.mxu0 %v1853
    %2516 = vmatprep.subr.bf16.mxu0 %v1858
    %2517 = vmatpush1.bf16.msra.mxu0 %v1857
    %2518 = vmatprep.subr.bf16.mxu0 %v1862
    %2519 = vmatpush1.bf16.msra.mxu0 %v1861
    %2520 = vmatprep.subr.bf16.mxu0 %v1866
    %2521 = vmatpush1.bf16.msra.mxu0 %v1865
    %2522 = vmatprep.subr.bf16.mxu0 %v1870
    %2523 = vmatpush1.bf16.msra.mxu0 %v1869
    %2524 = vmatprep.subr.bf16.mxu0 %v1874
    %2525 = vmatpush1.bf16.msra.mxu0 %v1873
    %2526 = vmatprep.subr.bf16.mxu0 %v1878
    %2527 = vmatpush1.bf16.msra.mxu0 %v1877
    %2528 = vmatprep.subr.bf16.mxu0 %v1882
    %2529 = vmatpush1.bf16.msra.mxu0 %v1881
    %2530 = vmatprep.subr.bf16.mxu0 %v1886
    %2531 = vmatpush1.bf16.msra.mxu0 %v1885
    %2532 = vmatprep.subr.bf16.mxu0 %v1890
    %2533 = vmatpush1.bf16.msra.mxu0 %v1889
    %2534 = vmatprep.subr.bf16.mxu0 %v1894
    %2535 = vmatpush1.bf16.msra.mxu0 %v1893
    %2536 = vmatprep.subr.bf16.mxu0 %v1898
    %2537 = vmatpush1.bf16.msra.mxu0 %v1897
    %2538 = vmatprep.subr.bf16.mxu0 %v1902
    %2539 = vmatpush1.bf16.msra.mxu0 %v1901
    %2540 = vmatprep.subr.bf16.mxu0 %v1906
    %2541 = vmatpush1.bf16.msra.mxu0 %v1905
    %2542 = vmatprep.subr.bf16.mxu0 %v1910
    %2543 = vmatpush1.bf16.msra.mxu0 %v1909
    %2544 = vmatprep.subr.bf16.mxu0 %v1914
    %2545 = vmatpush1.bf16.msra.mxu0 %v1913
    %2546 = vmatprep.mubr.bf16.mxu0 %v758
    %2547 = vmatmul.mubr.bf16.gmra.mrb[0].mxu0 %v757
    %v2548 = vpop.f32.mrb[0].mxu0
    %v2549 = vadd.f32 %v2506, %v2548
    %v2550 = vpop.f32.mrb[0].mxu0
    %v2551 = vadd.f32 %v2508, %v2550
    %v2552 = vpop.f32.mrb[0].mxu0
    %v2553 = vadd.f32 %v2510, %v2552
    %v2554 = vpop.f32.mrb[0].mxu0
    %v2555 = vadd.f32 %v2512, %v2554
    %2556 = vdwg.mxu0
    %2557 = vmatprep.subr.bf16.mxu0 %v1918
    %2558 = vmatpush1.bf16.msra.mxu0 %v1917
    %2559 = vmatprep.subr.bf16.mxu0 %v1922
    %2560 = vmatpush1.bf16.msra.mxu0 %v1921
    %2561 = vmatprep.subr.bf16.mxu0 %v1926
    %2562 = vmatpush1.bf16.msra.mxu0 %v1925
    %2563 = vmatprep.subr.bf16.mxu0 %v1930
    %2564 = vmatpush1.bf16.msra.mxu0 %v1929
    %2565 = vmatprep.subr.bf16.mxu0 %v1934
    %2566 = vmatpush1.bf16.msra.mxu0 %v1933
    %2567 = vmatprep.subr.bf16.mxu0 %v1938
    %2568 = vmatpush1.bf16.msra.mxu0 %v1937
    %2569 = vmatprep.subr.bf16.mxu0 %v1942
    %2570 = vmatpush1.bf16.msra.mxu0 %v1941
    %2571 = vmatprep.subr.bf16.mxu0 %v1946
    %2572 = vmatpush1.bf16.msra.mxu0 %v1945
    %2573 = vmatprep.subr.bf16.mxu0 %v1950
    %2574 = vmatpush1.bf16.msra.mxu0 %v1949
    %2575 = vmatprep.subr.bf16.mxu0 %v1954
    %2576 = vmatpush1.bf16.msra.mxu0 %v1953
    %2577 = vmatprep.subr.bf16.mxu0 %v1958
    %2578 = vmatpush1.bf16.msra.mxu0 %v1957
    %2579 = vmatprep.subr.bf16.mxu0 %v1962
    %2580 = vmatpush1.bf16.msra.mxu0 %v1961
    %2581 = vmatprep.subr.bf16.mxu0 %v1966
    %2582 = vmatpush1.bf16.msra.mxu0 %v1965
    %2583 = vmatprep.subr.bf16.mxu0 %v1970
    %2584 = vmatpush1.bf16.msra.mxu0 %v1969
    %2585 = vmatprep.subr.bf16.mxu0 %v1974
    %2586 = vmatpush1.bf16.msra.mxu0 %v1973
    %2587 = vmatprep.subr.bf16.mxu0 %v1978
    %2588 = vmatpush1.bf16.msra.mxu0 %v1977
    %2589 = vmatprep.mubr.bf16.mxu0 %v760
    %2590 = vmatmul.mubr.bf16.gmra.mrb[0].mxu0 %v759
    %v2591 = vpop.f32.mrb[0].mxu0
    %v2592 = vadd.f32 %v2549, %v2591
    %v2593 = vpop.f32.mrb[0].mxu0
    %v2594 = vadd.f32 %v2551, %v2593
    %v2595 = vpop.f32.mrb[0].mxu0
    %v2596 = vadd.f32 %v2553, %v2595
    %v2597 = vpop.f32.mrb[0].mxu0
    %v2598 = vadd.f32 %v2555, %v2597
    %2599 = vdwg.mxu0
    %2600 = vmatprep.subr.bf16.mxu0 %v1982
    %2601 = vmatpush1.bf16.msra.mxu0 %v1981
    %2602 = vmatprep.subr.bf16.mxu0 %v1986
    %2603 = vmatpush1.bf16.msra.mxu0 %v1985
    %2604 = vmatprep.subr.bf16.mxu0 %v1990
    %2605 = vmatpush1.bf16.msra.mxu0 %v1989
    %2606 = vmatprep.subr.bf16.mxu0 %v1994
    %2607 = vmatpush1.bf16.msra.mxu0 %v1993
    %2608 = vmatprep.subr.bf16.mxu0 %v1998
    %2609 = vmatpush1.bf16.msra.mxu0 %v1997
    %2610 = vmatprep.subr.bf16.mxu0 %v2002
    %2611 = vmatpush1.bf16.msra.mxu0 %v2001
    %2612 = vmatprep.subr.bf16.mxu0 %v2006
    %2613 = vmatpush1.bf16.msra.mxu0 %v2005
    %2614 = vmatprep.subr.bf16.mxu0 %v2010
    %2615 = vmatpush1.bf16.msra.mxu0 %v2009
    %2616 = vmatprep.subr.bf16.mxu0 %v2014
    %2617 = vmatpush1.bf16.msra.mxu0 %v2013
    %2618 = vmatprep.subr.bf16.mxu0 %v2018
    %2619 = vmatpush1.bf16.msra.mxu0 %v2017
    %2620 = vmatprep.subr.bf16.mxu0 %v2022
    %2621 = vmatpush1.bf16.msra.mxu0 %v2021
    %2622 = vmatprep.subr.bf16.mxu0 %v2026
    %2623 = vmatpush1.bf16.msra.mxu0 %v2025
    %2624 = vmatprep.subr.bf16.mxu0 %v2030
    %2625 = vmatpush1.bf16.msra.mxu0 %v2029
    %2626 = vmatprep.subr.bf16.mxu0 %v2034
    %2627 = vmatpush1.bf16.msra.mxu0 %v2033
    %2628 = vmatprep.subr.bf16.mxu0 %v2038
    %2629 = vmatpush1.bf16.msra.mxu0 %v2037
    %2630 = vmatprep.subr.bf16.mxu0 %v2042
    %2631 = vmatpush1.bf16.msra.mxu0 %v2041
    %2632 = vmatprep.mubr.bf16.mxu0 %v762
    %2633 = vmatmul.mubr.bf16.gmra.mrb[0].mxu0 %v761
    %v2634 = vpop.f32.mrb[0].mxu0
    %v2635 = vadd.f32 %v2592, %v2634
    %v2636 = vpop.f32.mrb[0].mxu0
    %v2637 = vadd.f32 %v2594, %v2636
    %v2638 = vpop.f32.mrb[0].mxu0
    %v2639 = vadd.f32 %v2596, %v2638
    %v2640 = vpop.f32.mrb[0].mxu0
    %v2641 = vadd.f32 %v2598, %v2640
    %2642 = vdwg.mxu0
    %v2643 = vpack.c.bf16 %v2467, %v2463
    %v2644 = vpack.c.bf16 %v2469, %v2465
    %v2645 = vpack.c.bf16 %v2639, %v2635
    %v2646 = vpack.c.bf16 %v2641, %v2637
    %v2647 = vld [vmem:[%s4] sm:$0xf]
    %v2650 = vunpack.c.l.s4 1966171168
    %v2651 = vunpack.c.0.s8 %v2650
    %v2652 = vlaneseq
    %v2653 = vshrl.u32 %v2652, 7
    %v2654 = vsub.s32 %v2651, %v2653
    %v2655 = vrot.slane %v2647, %v2654
    %v2656 = vcombine.high %v2655, %v2655
    %v2658 = vunpack.c.l.s4 1966171168
    %v2659 = vunpack.c.0.s8 %v2658
    %v2660 = vlaneseq
    %v2661 = vshrl.u32 %v2660, 7
    %v2662 = vsub.s32 %v2659, %v2661
    %v2663 = vrot.slane %v2655, %v2662
    %v2665 = vunpack.c.l.s4 1966171168
    %v2666 = vunpack.c.0.s8 %v2665
    %v2667 = vlaneseq
    %v2668 = vshrl.u32 %v2667, 7
    %v2669 = vsub.s32 %v2666, %v2668
    %v2670 = vrot.slane %v2656, %v2669
    %v2671 = vcombine.high %v2663, %v2663
    %v2672 = vcombine.high %v2670, %v2670
    %v2674 = vpack.i.b16 %v2663, %v2663
    %v2676 = vlaneseq
    %v2677 = vshrl.u32 %v2676, 7
    %v2678 = vsub.s32 0, %v2677
    %v2679 = vrot.slane %v2674, %v2678
    %v2681 = vpack.i.b16 %v2670, %v2670
    %v2683 = vlaneseq
    %v2684 = vshrl.u32 %v2683, 7
    %v2685 = vsub.s32 0, %v2684
    %v2686 = vrot.slane %v2681, %v2685
    %v2688 = vpack.i.b16 %v2671, %v2671
    %v2690 = vlaneseq
    %v2691 = vshrl.u32 %v2690, 7
    %v2692 = vsub.s32 0, %v2691
    %v2693 = vrot.slane %v2688, %v2692
    %v2695 = vpack.i.b16 %v2672, %v2672
    %v2697 = vlaneseq
    %v2698 = vshrl.u32 %v2697, 7
    %v2699 = vsub.s32 0, %v2698
    %v2700 = vrot.slane %v2695, %v2699
    %v2701 = vadd.bf16 %v2643, %v2679
    %v2702 = vadd.bf16 %v2644, %v2686
    %v2703 = vadd.bf16 %v2645, %v2693
    %v2704 = vadd.bf16 %v2646, %v2700
    %v2705 = vmax.bf16 %v2701, 0
    %v2706 = vmax.bf16 %v2702, 0
    %v2707 = vmax.bf16 %v2703, 0
    %v2708 = vmax.bf16 %v2704, 0
    %v2709 = vld [vmem:[#allocation6] sm:$0xf]
    %v2710 = vld [vmem:[#allocation6 + $0x4] sm:$0xf]
    %v2711 = vld [vmem:[#allocation6 + $0x8] sm:$0xf]
    %v2712 = vld [vmem:[#allocation6 + $0xc] sm:$0xf]
    %v2713 = vld [vmem:[#allocation6 + $0x10] sm:$0xf]
    %v2714 = vld [vmem:[#allocation6 + $0x14] sm:$0xf]
    %v2715 = vld [vmem:[#allocation6 + $0x18] sm:$0xf]
    %v2716 = vld [vmem:[#allocation6 + $0x1c] sm:$0xf]
    %v2717 = vld [vmem:[#allocation6 + $0x20] sm:$0xf]
    %v2718 = vld [vmem:[#allocation6 + $0x24] sm:$0xf]
    %v2719 = vld [vmem:[#allocation6 + $0x28] sm:$0xf]
    %v2720 = vld [vmem:[#allocation6 + $0x2c] sm:$0xf]
    %v2721 = vld [vmem:[#allocation6 + $0x30] sm:$0xf]
    %v2722 = vld [vmem:[#allocation6 + $0x34] sm:$0xf]
    %v2723 = vld [vmem:[#allocation6 + $0x38] sm:$0xf]
    %v2724 = vld [vmem:[#allocation6 + $0x3c] sm:$0xf]
    %v2725 = vld [vmem:[#allocation6 + $0x40] sm:$0xf]
    %v2726 = vld [vmem:[#allocation6 + $0x44] sm:$0xf]
    %v2727 = vld [vmem:[#allocation6 + $0x48] sm:$0xf]
    %v2728 = vld [vmem:[#allocation6 + $0x4c] sm:$0xf]
    %v2729 = vld [vmem:[#allocation6 + $0x50] sm:$0xf]
    %v2730 = vld [vmem:[#allocation6 + $0x54] sm:$0xf]
    %v2731 = vld [vmem:[#allocation6 + $0x58] sm:$0xf]
    %v2732 = vld [vmem:[#allocation6 + $0x5c] sm:$0xf]
    %v2733 = vld [vmem:[#allocation6 + $0x60] sm:$0xf]
    %v2734 = vld [vmem:[#allocation6 + $0x64] sm:$0xf]
    %v2735 = vld [vmem:[#allocation6 + $0x68] sm:$0xf]
    %v2736 = vld [vmem:[#allocation6 + $0x6c] sm:$0xf]
    %v2737 = vld [vmem:[#allocation6 + $0x70] sm:$0xf]
    %v2738 = vld [vmem:[#allocation6 + $0x74] sm:$0xf]
    %v2739 = vld [vmem:[#allocation6 + $0x78] sm:$0xf]
    %v2740 = vld [vmem:[#allocation6 + $0x7c] sm:$0xf]
    %v2741 = vld [vmem:[#allocation6 + $0x80] sm:$0xf]
    %v2742 = vld [vmem:[#allocation6 + $0x84] sm:$0xf]
    %v2743 = vld [vmem:[#allocation6 + $0x88] sm:$0xf]
    %v2744 = vld [vmem:[#allocation6 + $0x8c] sm:$0xf]
    %v2745 = vld [vmem:[#allocation6 + $0x90] sm:$0xf]
    %v2746 = vld [vmem:[#allocation6 + $0x94] sm:$0xf]
    %v2747 = vld [vmem:[#allocation6 + $0x98] sm:$0xf]
    %v2748 = vld [vmem:[#allocation6 + $0x9c] sm:$0xf]
    %v2749 = vld [vmem:[#allocation6 + $0xa0] sm:$0xf]
    %v2750 = vld [vmem:[#allocation6 + $0xa4] sm:$0xf]
    %v2751 = vld [vmem:[#allocation6 + $0xa8] sm:$0xf]
    %v2752 = vld [vmem:[#allocation6 + $0xac] sm:$0xf]
    %v2753 = vld [vmem:[#allocation6 + $0xb0] sm:$0xf]
    %v2754 = vld [vmem:[#allocation6 + $0xb4] sm:$0xf]
    %v2755 = vld [vmem:[#allocation6 + $0xb8] sm:$0xf]
    %v2756 = vld [vmem:[#allocation6 + $0xbc] sm:$0xf]
    %v2757 = vld [vmem:[#allocation6 + $0xc0] sm:$0xf]
    %v2758 = vld [vmem:[#allocation6 + $0xc4] sm:$0xf]
    %v2759 = vld [vmem:[#allocation6 + $0xc8] sm:$0xf]
    %v2760 = vld [vmem:[#allocation6 + $0xcc] sm:$0xf]
    %v2761 = vld [vmem:[#allocation6 + $0xd0] sm:$0xf]
    %v2762 = vld [vmem:[#allocation6 + $0xd4] sm:$0xf]
    %v2763 = vld [vmem:[#allocation6 + $0xd8] sm:$0xf]
    %v2764 = vld [vmem:[#allocation6 + $0xdc] sm:$0xf]
    %v2765 = vld [vmem:[#allocation6 + $0xe0] sm:$0xf]
    %v2766 = vld [vmem:[#allocation6 + $0xe4] sm:$0xf]
    %v2767 = vld [vmem:[#allocation6 + $0xe8] sm:$0xf]
    %v2768 = vld [vmem:[#allocation6 + $0xec] sm:$0xf]
    %v2769 = vld [vmem:[#allocation6 + $0xf0] sm:$0xf]
    %v2770 = vld [vmem:[#allocation6 + $0xf4] sm:$0xf]
    %v2771 = vld [vmem:[#allocation6 + $0xf8] sm:$0xf]
    %v2772 = vld [vmem:[#allocation6 + $0xfc] sm:$0xf]
    %v2773 = vld [vmem:[%s6] sm:$0x1]
    %v2775 = vlaneseq
    %v2776 = vshrl.u32 %v2775, 7
    %v2777 = vsub.s32 0, %v2776
    %v2778 = vrot.slane %v2773, %v2777
    %v2844 = vunpack.c.l.b16 %v2709
    %v2845 = vunpack.c.l.b16 %v2710
    %v2846 = vunpack.c.l.b16 %v2711
    %v2847 = vunpack.c.l.b16 %v2712
    %v2848 = vunpack.c.l.b16 %v2713
    %v2849 = vunpack.c.l.b16 %v2714
    %v2850 = vunpack.c.l.b16 %v2715
    %v2851 = vunpack.c.l.b16 %v2716
    %v2852 = vunpack.c.l.b16 %v2717
    %v2853 = vunpack.c.l.b16 %v2718
    %v2854 = vunpack.c.l.b16 %v2719
    %v2855 = vunpack.c.l.b16 %v2720
    %v2856 = vunpack.c.l.b16 %v2721
    %v2857 = vunpack.c.l.b16 %v2722
    %v2858 = vunpack.c.l.b16 %v2723
    %v2859 = vunpack.c.l.b16 %v2724
    %v2860 = vunpack.c.l.b16 %v2725
    %v2861 = vunpack.c.l.b16 %v2726
    %v2862 = vunpack.c.l.b16 %v2727
    %v2863 = vunpack.c.l.b16 %v2728
    %v2864 = vunpack.c.l.b16 %v2729
    %v2865 = vunpack.c.l.b16 %v2730
    %v2866 = vunpack.c.l.b16 %v2731
    %v2867 = vunpack.c.l.b16 %v2732
    %v2868 = vunpack.c.l.b16 %v2733
    %v2869 = vunpack.c.l.b16 %v2734
    %v2870 = vunpack.c.l.b16 %v2735
    %v2871 = vunpack.c.l.b16 %v2736
    %v2872 = vunpack.c.l.b16 %v2737
    %v2873 = vunpack.c.l.b16 %v2738
    %v2874 = vunpack.c.l.b16 %v2739
    %v2875 = vunpack.c.l.b16 %v2740
    %v2876 = vunpack.c.l.b16 %v2741
    %v2877 = vunpack.c.l.b16 %v2742
    %v2878 = vunpack.c.l.b16 %v2743
    %v2879 = vunpack.c.l.b16 %v2744
    %v2880 = vunpack.c.l.b16 %v2745
    %v2881 = vunpack.c.l.b16 %v2746
    %v2882 = vunpack.c.l.b16 %v2747
    %v2883 = vunpack.c.l.b16 %v2748
    %v2884 = vunpack.c.l.b16 %v2749
    %v2885 = vunpack.c.l.b16 %v2750
    %v2886 = vunpack.c.l.b16 %v2751
    %v2887 = vunpack.c.l.b16 %v2752
    %v2888 = vunpack.c.l.b16 %v2753
    %v2889 = vunpack.c.l.b16 %v2754
    %v2890 = vunpack.c.l.b16 %v2755
    %v2891 = vunpack.c.l.b16 %v2756
    %v2892 = vunpack.c.l.b16 %v2757
    %v2893 = vunpack.c.l.b16 %v2758
    %v2894 = vunpack.c.l.b16 %v2759
    %v2895 = vunpack.c.l.b16 %v2760
    %v2896 = vunpack.c.l.b16 %v2761
    %v2897 = vunpack.c.l.b16 %v2762
    %v2898 = vunpack.c.l.b16 %v2763
    %v2899 = vunpack.c.l.b16 %v2764
    %v2900 = vunpack.c.l.b16 %v2765
    %v2901 = vunpack.c.l.b16 %v2766
    %v2902 = vunpack.c.l.b16 %v2767
    %v2903 = vunpack.c.l.b16 %v2768
    %v2904 = vunpack.c.l.b16 %v2769
    %v2905 = vunpack.c.l.b16 %v2770
    %v2906 = vunpack.c.l.b16 %v2771
    %v2907 = vunpack.c.l.b16 %v2772
    %v2908 = vpack.c.b16 %v2845, %v2844
    %v2909 = vpack.c.b16 %v2847, %v2846
    %v2910 = vpack.c.b16 %v2849, %v2848
    %v2911 = vpack.c.b16 %v2851, %v2850
    %v2912 = vpack.c.b16 %v2853, %v2852
    %v2913 = vpack.c.b16 %v2855, %v2854
    %v2914 = vpack.c.b16 %v2857, %v2856
    %v2915 = vpack.c.b16 %v2859, %v2858
    %v2916 = vpack.c.b16 %v2861, %v2860
    %v2917 = vpack.c.b16 %v2863, %v2862
    %v2918 = vpack.c.b16 %v2865, %v2864
    %v2919 = vpack.c.b16 %v2867, %v2866
    %v2920 = vpack.c.b16 %v2869, %v2868
    %v2921 = vpack.c.b16 %v2871, %v2870
    %v2922 = vpack.c.b16 %v2873, %v2872
    %v2923 = vpack.c.b16 %v2875, %v2874
    %v2924 = vpack.c.b16 %v2877, %v2876
    %v2925 = vpack.c.b16 %v2879, %v2878
    %v2926 = vpack.c.b16 %v2881, %v2880
    %v2927 = vpack.c.b16 %v2883, %v2882
    %v2928 = vpack.c.b16 %v2885, %v2884
    %v2929 = vpack.c.b16 %v2887, %v2886
    %v2930 = vpack.c.b16 %v2889, %v2888
    %v2931 = vpack.c.b16 %v2891, %v2890
    %v2932 = vpack.c.b16 %v2893, %v2892
    %v2933 = vpack.c.b16 %v2895, %v2894
    %v2934 = vpack.c.b16 %v2897, %v2896
    %v2935 = vpack.c.b16 %v2899, %v2898
    %v2936 = vpack.c.b16 %v2901, %v2900
    %v2937 = vpack.c.b16 %v2903, %v2902
    %v2938 = vpack.c.b16 %v2905, %v2904
    %v2939 = vpack.c.b16 %v2907, %v2906
    %2972 = vmatprep.subr.bf16.mxu0 0
    %2973 = vmatpush1.bf16.msra.mxu0 %v2908
    %2974 = vmatprep.subr.bf16.mxu0 0
    %2975 = vmatpush1.bf16.msra.mxu0 %v2909
    %2976 = vmatprep.subr.bf16.mxu0 0
    %2977 = vmatpush1.bf16.msra.mxu0 %v2910
    %2978 = vmatprep.subr.bf16.mxu0 0
    %2979 = vmatpush1.bf16.msra.mxu0 %v2911
    %2980 = vmatprep.subr.bf16.mxu0 0
    %2981 = vmatpush1.bf16.msra.mxu0 %v2912
    %2982 = vmatprep.subr.bf16.mxu0 0
    %2983 = vmatpush1.bf16.msra.mxu0 %v2913
    %2984 = vmatprep.subr.bf16.mxu0 0
    %2985 = vmatpush1.bf16.msra.mxu0 %v2914
    %2986 = vmatprep.subr.bf16.mxu0 0
    %2987 = vmatpush1.bf16.msra.mxu0 %v2915
    %2988 = vmatprep.subr.bf16.mxu0 0
    %2989 = vmatpush1.bf16.msra.mxu0 %v2916
    %2990 = vmatprep.subr.bf16.mxu0 0
    %2991 = vmatpush1.bf16.msra.mxu0 %v2917
    %2992 = vmatprep.subr.bf16.mxu0 0
    %2993 = vmatpush1.bf16.msra.mxu0 %v2918
    %2994 = vmatprep.subr.bf16.mxu0 0
    %2995 = vmatpush1.bf16.msra.mxu0 %v2919
    %2996 = vmatprep.subr.bf16.mxu0 0
    %2997 = vmatpush1.bf16.msra.mxu0 %v2920
    %2998 = vmatprep.subr.bf16.mxu0 0
    %2999 = vmatpush1.bf16.msra.mxu0 %v2921
    %3000 = vmatprep.subr.bf16.mxu0 0
    %3001 = vmatpush1.bf16.msra.mxu0 %v2922
    %3002 = vmatprep.subr.bf16.mxu0 0
    %3003 = vmatpush1.bf16.msra.mxu0 %v2923
    %3004 = vmatprep.mubr.bf16.mxu0 %v2706
    %3005 = vmatmul.mubr.bf16.gmra.mrb[0].mxu0 %v2705
    %v3006 = vpop.f32.mrb[0].mxu0
    %v3007 = vadd.f32 %v2778, %v3006
    %v3008 = vpop.f32.mrb[0].mxu0
    %v3009 = vpop.f32.mrb[0].mxu0
    %v3010 = vadd.f32 %v2778, %v3009
    %v3011 = vpop.f32.mrb[0].mxu0
    %3012 = vdwg.mxu0
    %3013 = vmatprep.subr.bf16.mxu0 0
    %3014 = vmatpush1.bf16.msra.mxu0 %v2924
    %3015 = vmatprep.subr.bf16.mxu0 0
    %3016 = vmatpush1.bf16.msra.mxu0 %v2925
    %3017 = vmatprep.subr.bf16.mxu0 0
    %3018 = vmatpush1.bf16.msra.mxu0 %v2926
    %3019 = vmatprep.subr.bf16.mxu0 0
    %3020 = vmatpush1.bf16.msra.mxu0 %v2927
    %3021 = vmatprep.subr.bf16.mxu0 0
    %3022 = vmatpush1.bf16.msra.mxu0 %v2928
    %3023 = vmatprep.subr.bf16.mxu0 0
    %3024 = vmatpush1.bf16.msra.mxu0 %v2929
    %3025 = vmatprep.subr.bf16.mxu0 0
    %3026 = vmatpush1.bf16.msra.mxu0 %v2930
    %3027 = vmatprep.subr.bf16.mxu0 0
    %3028 = vmatpush1.bf16.msra.mxu0 %v2931
    %3029 = vmatprep.subr.bf16.mxu0 0
    %3030 = vmatpush1.bf16.msra.mxu0 %v2932
    %3031 = vmatprep.subr.bf16.mxu0 0
    %3032 = vmatpush1.bf16.msra.mxu0 %v2933
    %3033 = vmatprep.subr.bf16.mxu0 0
    %3034 = vmatpush1.bf16.msra.mxu0 %v2934
    %3035 = vmatprep.subr.bf16.mxu0 0
    %3036 = vmatpush1.bf16.msra.mxu0 %v2935
    %3037 = vmatprep.subr.bf16.mxu0 0
    %3038 = vmatpush1.bf16.msra.mxu0 %v2936
    %3039 = vmatprep.subr.bf16.mxu0 0
    %3040 = vmatpush1.bf16.msra.mxu0 %v2937
    %3041 = vmatprep.subr.bf16.mxu0 0
    %3042 = vmatpush1.bf16.msra.mxu0 %v2938
    %3043 = vmatprep.subr.bf16.mxu0 0
    %3044 = vmatpush1.bf16.msra.mxu0 %v2939
    %3045 = vmatprep.mubr.bf16.mxu0 %v2708
    %3046 = vmatmul.mubr.bf16.gmra.mrb[0].mxu0 %v2707
    %v3047 = vpop.f32.mrb[0].mxu0
    %v3048 = vadd.f32 %v3007, %v3047
    %v3049 = vpop.f32.mrb[0].mxu0
    %v3050 = vpop.f32.mrb[0].mxu0
    %v3051 = vadd.f32 %v3010, %v3050
    %v3052 = vpop.f32.mrb[0].mxu0
    %3053 = vdwg.mxu0
    %3054 = vst [vmem:[%s7] sm:$0xff] %v3048
    %3055 = vst [vmem:[%s7 + $0x8] sm:$0xff] %v3051
    // Predicated region
    $region42: #{myfcnet3_forward.1} parent=1 // pred_check
      _
    $region43: #{myfcnet3_forward.1} parent=1 // pred_check_branch
      %3057 = sbr.rel (0) target = $region45
    $region44: #{myfcnet3_forward.1} parent=1 // pred_region
      _
    $region45: #{myfcnet3_forward.1} parent=1 // pred_fallthru
      _
    // Predicated region
    $region46: #{myfcnet3_forward.1} parent=1 // pred_check
      _
    $region47: #{myfcnet3_forward.1} parent=1 // pred_check_branch
      %3059 = sbr.rel (0) target = $region49
    $region48: #{myfcnet3_forward.1} parent=1 // pred_region
      _
    $region49: #{myfcnet3_forward.1} parent=1 // pred_fallthru
      _
    %3060 = vsyncpa [#allocation3], 1
    %3061 = vsyncpa [#allocation5], 1

</llo_original>
